<compile_context>
chip_gen: v6e
topology: v6e:2x2x1
jax: 0.10.0
libtpu: 0.0.40
codegen_flags: <defaults>
</compile_context>

<pallas_src>
import functools

import jax
import jax.numpy as jnp
from jax import lax
from jax.experimental import pallas as pl
from jax.experimental.pallas import tpu as pltpu


# ----------------------------------------------------------------------------
# helpers
# ----------------------------------------------------------------------------
def _round_up(v, m):
    return (v + m - 1) // m * m


def _divisors(n):
    return [d for d in range(1, n + 1) if n % d == 0]


def _pick_c_blk(C4, K3, itemsize, w_budget=4 << 20, c_cap=1024):
    """Largest lane chunk (multiple of 128 dividing C4) with a bounded weight slice."""
    best = 128
    for d in _divisors(C4):
        if d % 128 or d > c_cap:
            continue
        if 3 * K3 * d * itemsize > w_budget:
            continue
        best = max(best, d)
    return best


def _pick_tiles(H, W, K3, c_blk, itemsize,
                max_rows=1024, x_budget=2 << 20, acc_budget=4 << 20):
    """Pick (th, w_blk): th|H, w_blk|W, w_blk a multiple of 16 when possible, sized by bytes."""
    w_cands = sorted([d for d in _divisors(W) if d % 16 == 0], reverse=True)
    if not w_cands:
        # TODO(synk): W with no multiple-of-16 divisor -> the in-kernel (th,w,K)->(th*w,K)
        # reshape may relayout; still correct, just not free.
        w_cands = [W]
    h_cands = sorted(_divisors(H), reverse=True)
    for wb in w_cands:
        for th in h_cands:
            rows = th * wb
            if rows > max_rows:
                continue
            if (th + 2) * wb * K3 * itemsize > x_budget:
                continue
            if rows * c_blk * 4 > acc_budget:
                continue
            return th, wb
    return 1, w_cands[-1]


# ----------------------------------------------------------------------------
# forward
# ----------------------------------------------------------------------------
@functools.partial(jax.jit, static_argnames=("compute_dtype",))
def up_conv_forward(x_nchw, conv_w, conv_b, bn_gamma, bn_beta,
                    *, compute_dtype=jnp.bfloat16, eps=1e-5):
    del conv_b  # conv bias cancels exactly through train-mode BatchNorm

    N, Cin, H, W = x_nchw.shape
    Cout = conv_w.shape[0]
    cdt = compute_dtype
    itemsize = jnp.dtype(cdt).itemsize
    K3 = 3 * Cin                              # column taps packed along matmul K
    C4 = _round_up(4 * Cout, 128)             # phases packed first, then lane pad (review #5)

    c_blk = _pick_c_blk(C4, K3, itemsize)
    th, w_blk = _pick_tiles(H, W, K3, c_blk, itemsize)
    nh, nw, nc = H // th, W // w_blk, C4 // c_blk
    rows_t = th * w_blk

    # ---------------- prologue: ONE XLA relayout pass over the (small) input --------
    # NCHW -> NHWC, cast, single H/W pad, pack the 3 column taps along lanes (K=3*Cin),
    # and gather per-tile row windows (incl. the two halo rows) so every BlockSpec is a
    # plain non-overlapping block and the kernel needs no concatenate / unaligned slice.
    x = jnp.transpose(x_nchw, (0, 2, 3, 1)).astype(cdt)                 # (N, H, W, Cin)
    xp = jnp.pad(x, ((0, 0), (1, 1), (1, 1), (0, 0)))                   # (N, H+2, W+2, Cin)
    xk = jnp.concatenate([xp[:, :, 0:W], xp[:, :, 1:W + 1], xp[:, :, 2:W + 2]],
                         axis=-1)                                        # (N, H+2, W, 3*Cin)
    row_idx = jnp.arange(nh)[:, None] * th + jnp.arange(th + 2)[None, :]
    x_tiles = xk[:, row_idx]                                             # (N, nh, th+2, W, 3*Cin)

    # Fold upsample+conv into per-phase 3x3 taps over the original image:
    #   out[n, 2r+dr, 2c+dc, co] = sum_{ta,tb,ci} w_eff[ta,tb,ci, p*Cout+co] * xpad[r+ta, c+tb, ci]
    kmat = conv_w.astype(jnp.float32)                                    # (Cout, Cin, 3, 3)
    w_eff = jnp.zeros((3, 3, Cin, C4), jnp.float32)
    for dr in range(2):
        for dc in range(2):
            p = 2 * dr + dc
            for a in range(3):
                for b in range(3):
                    ta = (dr - 1 + a) // 2 + 1
                    tb = (dc - 1 + b) // 2 + 1
                    w_eff = w_eff.at[ta, tb, :, p * Cout:(p + 1) * Cout].add(
                        kmat[:, :, a, b].T)
    w_k = w_eff.reshape(3, K3, C4).astype(cdt)                           # (3, 3*Cin, C4)

    # ---------------- kernel: fused upsample+conv + per-tile BN partial sums --------
    def conv_kernel(x_ref, w_ref, y_ref, stats_ref):
        xt = x_ref[...][0, 0]                                            # (th+2, w_blk, 3*Cin)
        # Three MXU dots with K = 3*Cin (column taps pre-packed along K); row taps are
        # cheap outer-dim shifts.  Pure chain of dots -> MRB accumulation on v7x, only
        # 2 VPU adds (vs 9 accumulator RMW passes before) on v5e/v6e.
        acc = (
            jnp.dot(xt[0:th].reshape(rows_t, K3), w_ref[0],
                    preferred_element_type=jnp.float32)
            + jnp.dot(xt[1:th + 1].reshape(rows_t, K3), w_ref[1],
                      preferred_element_type=jnp.float32)
            + jnp.dot(xt[2:th + 2].reshape(rows_t, K3), w_ref[2],
                      preferred_element_type=jnp.float32))
        y_ref[...] = acc.astype(y_ref.dtype).reshape(1, th, w_blk, c_blk)
        s = jnp.sum(acc, axis=0, keepdims=True)                          # f32 partial sums
        q = jnp.sum(acc * acc, axis=0, keepdims=True)
        stats_ref[...] = jnp.concatenate([s, q], axis=0).reshape(1, 1, 1, 2, c_blk)

    y, stats = pl.pallas_call(
        conv_kernel,
        out_shape=(
            jax.ShapeDtypeStruct((N, H, W, C4), cdt),                    # phase-packed conv out
            jax.ShapeDtypeStruct((N, nh, nw, 2, C4), jnp.float32),       # per-tile [sum; sumsq]
        ),
        grid=(N, nh, nw, nc),
        in_specs=[
            pl.BlockSpec((1, 1, th + 2, w_blk, K3), lambda n, i, j, c: (n, i, 0, j, 0)),
            pl.BlockSpec((3, K3, c_blk), lambda n, i, j, c: (0, 0, c)),
        ],
        out_specs=(
            pl.BlockSpec((1, th, w_blk, c_blk), lambda n, i, j, c: (n, i, j, c)),
            pl.BlockSpec((1, 1, 1, 2, c_blk), lambda n, i, j, c: (n, i, j, 0, c)),
        ),
        compiler_params=pltpu.CompilerParams(
            dimension_semantics=("parallel", "parallel", "parallel", "parallel"),
            vmem_limit_bytes=48 * 1024 * 1024),                          # v7x headroom
    )(x_tiles, w_k)

    # ---------------- BN statistics (train-mode, biased var) -- tiny XLA reduce ------
    s_l = jnp.sum(stats[:, :, :, 0, :], axis=(0, 1, 2))                  # (C4,)
    q_l = jnp.sum(stats[:, :, :, 1, :], axis=(0, 1, 2))
    s_c = s_l[:4 * Cout].reshape(4, Cout).sum(axis=0)                    # (Cout,)
    q_c = q_l[:4 * Cout].reshape(4, Cout).sum(axis=0)
    cnt = jnp.float32(N * H * W * 4)                                     # = N * (2H) * (2W)
    mean = s_c / cnt
    # TODO(synk): E[x^2]-E[x]^2 in f32 can cancel for huge N*H*W with |mean| >> std;
    # switch to per-tile centered sums if this ever feeds large-scale training.
    var = q_c / cnt - mean * mean
    inv_std = lax.rsqrt(var + eps)
    scale = bn_gamma.astype(jnp.float32) * inv_std
    shift = bn_beta.astype(jnp.float32) - mean * scale
    scale_l = jnp.pad(jnp.tile(scale, 4), (0, C4 - 4 * Cout))            # lane = p*Cout + co
    shift_l = jnp.pad(jnp.tile(shift, 4), (0, C4 - 4 * Cout))

    # ---------------- epilogue: BN affine + ReLU fused into the de-interleave --------
    # Expressed in jnp so XLA fuses it into the phase de-interleave / NCHW transpose:
    # the large output makes ONE HBM round trip (read bf16 y, write f32 NCHW).
    # TODO(synk): emitting NCHW directly from a Pallas epilogue kernel would require an
    # in-kernel lane->sublane transpose of the whole tile; left to XLA's transpose fusion.
    yf = jnp.maximum(y.astype(jnp.float32) * scale_l + shift_l, 0.0)
    o = yf[..., :4 * Cout].reshape(N, H, W, 2, 2, Cout)
    o = jnp.transpose(o, (0, 5, 1, 3, 2, 4))                             # (N, Cout, H, 2, W, 2)
    return o.reshape(N, Cout, 2 * H, 2 * W)


# ----------------------------------------------------------------------------
# Pure-JAX reference (includes the conv bias, to verify it cancels through BN).
# ----------------------------------------------------------------------------
def _reference(x_nchw, conv_w, conv_b, bn_gamma, bn_beta, eps=1e-5):
    x = jnp.repeat(jnp.repeat(x_nchw, 2, axis=2), 2, axis=3)
    y = lax.conv_general_dilated(
        x, conv_w, window_strides=(1, 1), padding=((1, 1), (1, 1)),
        dimension_numbers=("NCHW", "OIHW", "NCHW"))
    y = y + conv_b.reshape(1, -1, 1, 1)
    mean = jnp.mean(y, axis=(0, 2, 3), keepdims=True)
    var = jnp.mean((y - mean) ** 2, axis=(0, 2, 3), keepdims=True)
    y = (y - mean) / jnp.sqrt(var + eps)
    y = y * bn_gamma.reshape(1, -1, 1, 1) + bn_beta.reshape(1, -1, 1, 1)
    return jnp.maximum(y, 0.0)


if __name__ == "__main__":
    N, Cin, Cout, H, W = 2, 4, 8, 16, 16

    key = jax.random.PRNGKey(0)
    kx, kw, kb = jax.random.split(key, 3)

    x = jax.random.normal(kx, (N, Cin, H, W), dtype=jnp.float32)
    conv_w = jax.random.normal(kw, (Cout, Cin, 3, 3), dtype=jnp.float32) * 0.1
    conv_b = jax.random.normal(kb, (Cout,), dtype=jnp.float32) * 0.1
    bn_gamma = jnp.ones((Cout,), dtype=jnp.float32)   # BatchNorm2d default weight
    bn_beta = jnp.zeros((Cout,), dtype=jnp.float32)   # BatchNorm2d default bias

    ref = _reference(x, conv_w, conv_b, bn_gamma, bn_beta)

    # f32 mode: tight check of the fused upsample/conv/BN/ReLU math (incl. bias drop).
    out_f32 = jax.block_until_ready(
        up_conv_forward(x, conv_w, conv_b, bn_gamma, bn_beta, compute_dtype=jnp.float32))
    assert out_f32.shape == (N, Cout, 2 * H, 2 * W)
    assert jnp.allclose(out_f32, ref, rtol=5e-4, atol=5e-4)

    # perf mode (default): bf16 MXU operands + bf16 intermediate, f32 accumulation/stats.
    out = jax.block_until_ready(
        up_conv_forward(x, conv_w, conv_b, bn_gamma, bn_beta))
    assert out.shape == (N, Cout, 2 * H, 2 * W)
    assert jnp.allclose(out, ref, rtol=3e-2, atol=3e-2)

    print("KERNEL_OK")
</pallas_src>

<mosaic_0001>
module attributes {stable_mosaic.version = 11 : i64} {
  func.func @conv_kernel(%arg0: i32, %arg1: i32, %arg2: i32, %arg3: i32, %arg4: memref<1x1x18x16x12xf32, #tpu.memory_space<vmem>>, %arg5: memref<3x12x128xf32, #tpu.memory_space<vmem>>, %arg6: memref<1x16x16x128xf32, #tpu.memory_space<vmem>>, %arg7: memref<1x1x1x2x128xf32, #tpu.memory_space<vmem>>) attributes {dimension_semantics = [#tpu.dimension_semantics<parallel>, #tpu.dimension_semantics<parallel>, #tpu.dimension_semantics<parallel>, #tpu.dimension_semantics<parallel>], iteration_bounds = array<i64: 2, 1, 1, 1>, scalar_prefetch = 0 : i64, scratch_operands = 0 : i64, tpu.core_type = #tpu.core_type<tc>, window_params = [{transform_indices = @transform_0, window_bounds = array<i64: 1, 1, 18, 16, 12>}, {transform_indices = @transform_1, window_bounds = array<i64: 3, 12, 128>}, {transform_indices = @transform_2, window_bounds = array<i64: 1, 16, 16, 128>}, {transform_indices = @transform_3, window_bounds = array<i64: 1, 1, 1, 2, 128>}]} {
    %c0 = arith.constant 0 : index
    %c0_0 = arith.constant 0 : index
    %c0_1 = arith.constant 0 : index
    %c0_2 = arith.constant 0 : index
    %c0_3 = arith.constant 0 : index
    %0 = vector.load %arg4[%c0, %c0_0, %c0_1, %c0_2, %c0_3] : memref<1x1x18x16x12xf32, #tpu.memory_space<vmem>>, vector<1x1x18x16x12xf32>
    %1 = vector.shape_cast %0 : vector<1x1x18x16x12xf32> to vector<18x16x12xf32>
    %2 = vector.extract_strided_slice %1 {offsets = [0, 0, 0], sizes = [16, 16, 12], strides = [1, 1, 1]} : vector<18x16x12xf32> to vector<16x16x12xf32>
    %3 = vector.shape_cast %2 : vector<16x16x12xf32> to vector<256x12xf32>
    %c0_4 = arith.constant 0 : index
    %c0_5 = arith.constant 0 : index
    %c0_6 = arith.constant 0 : index
    %4 = vector.load %arg5[%c0_4, %c0_5, %c0_6] : memref<3x12x128xf32, #tpu.memory_space<vmem>>, vector<1x12x128xf32>
    %5 = vector.shape_cast %4 : vector<1x12x128xf32> to vector<12x128xf32>
    %cst = arith.constant dense<0.000000e+00> : vector<256x128xf32>
    %6 = tpu.matmul %3, %5, %cst {dimension_numbers = #tpu.dot_dimension_numbers<[1], [0], [0], [1], [0, 0, 1, 1], [], []>} : vector<256x12xf32>, vector<12x128xf32>, vector<256x128xf32> -> vector<256x128xf32>
    %7 = vector.extract_strided_slice %1 {offsets = [1, 0, 0], sizes = [16, 16, 12], strides = [1, 1, 1]} : vector<18x16x12xf32> to vector<16x16x12xf32>
    %8 = vector.shape_cast %7 : vector<16x16x12xf32> to vector<256x12xf32>
    %c1 = arith.constant 1 : index
    %c0_7 = arith.constant 0 : index
    %c0_8 = arith.constant 0 : index
    %9 = vector.load %arg5[%c1, %c0_7, %c0_8] : memref<3x12x128xf32, #tpu.memory_space<vmem>>, vector<1x12x128xf32>
    %10 = vector.shape_cast %9 : vector<1x12x128xf32> to vector<12x128xf32>
    %cst_9 = arith.constant dense<0.000000e+00> : vector<256x128xf32>
    %11 = tpu.matmul %8, %10, %cst_9 {dimension_numbers = #tpu.dot_dimension_numbers<[1], [0], [0], [1], [0, 0, 1, 1], [], []>} : vector<256x12xf32>, vector<12x128xf32>, vector<256x128xf32> -> vector<256x128xf32>
    %12 = arith.addf %6, %11 : vector<256x128xf32>
    %13 = vector.extract_strided_slice %1 {offsets = [2, 0, 0], sizes = [16, 16, 12], strides = [1, 1, 1]} : vector<18x16x12xf32> to vector<16x16x12xf32>
    %14 = vector.shape_cast %13 : vector<16x16x12xf32> to vector<256x12xf32>
    %c2 = arith.constant 2 : index
    %c0_10 = arith.constant 0 : index
    %c0_11 = arith.constant 0 : index
    %15 = vector.load %arg5[%c2, %c0_10, %c0_11] : memref<3x12x128xf32, #tpu.memory_space<vmem>>, vector<1x12x128xf32>
    %16 = vector.shape_cast %15 : vector<1x12x128xf32> to vector<12x128xf32>
    %cst_12 = arith.constant dense<0.000000e+00> : vector<256x128xf32>
    %17 = tpu.matmul %14, %16, %cst_12 {dimension_numbers = #tpu.dot_dimension_numbers<[1], [0], [0], [1], [0, 0, 1, 1], [], []>} : vector<256x12xf32>, vector<12x128xf32>, vector<256x128xf32> -> vector<256x128xf32>
    %18 = arith.addf %12, %17 : vector<256x128xf32>
    %19 = vector.shape_cast %18 : vector<256x128xf32> to vector<1x16x16x128xf32>
    %c0_13 = arith.constant 0 : index
    %c0_14 = arith.constant 0 : index
    %c0_15 = arith.constant 0 : index
    %c0_16 = arith.constant 0 : index
    %20 = vector.load %arg6[%c0_13, %c0_14, %c0_15, %c0_16] : memref<1x16x16x128xf32, #tpu.memory_space<vmem>>, vector<1x16x16x128xf32>
    tpu.vector_store %arg6[%c0_13, %c0_14, %c0_15, %c0_16], %19 {strides = array<i32>} : memref<1x16x16x128xf32, #tpu.memory_space<vmem>>, vector<1x16x16x128xf32>,
    %cst_17 = arith.constant dense<0.000000e+00> : vector<128xf32>
    %21 = vector.multi_reduction <add>, %18, %cst_17 [0] : vector<256x128xf32> to vector<128xf32>
    %22 = vector.shape_cast %21 : vector<128xf32> to vector<1x128xf32>
    %23 = arith.mulf %18, %18 : vector<256x128xf32>
    %cst_18 = arith.constant dense<0.000000e+00> : vector<128xf32>
    %24 = vector.multi_reduction <add>, %23, %cst_18 [0] : vector<256x128xf32> to vector<128xf32>
    %25 = vector.shape_cast %24 : vector<128xf32> to vector<1x128xf32>
    %26 = tpu.concatenate %22, %25 in 0 : vector<1x128xf32>, vector<1x128xf32> -> vector<2x128xf32>
    %27 = vector.shape_cast %26 : vector<2x128xf32> to vector<1x1x1x2x128xf32>
    %c0_19 = arith.constant 0 : index
    %c0_20 = arith.constant 0 : index
    %c0_21 = arith.constant 0 : index
    %c0_22 = arith.constant 0 : index
    %c0_23 = arith.constant 0 : index
    %28 = vector.load %arg7[%c0_19, %c0_20, %c0_21, %c0_22, %c0_23] : memref<1x1x1x2x128xf32, #tpu.memory_space<vmem>>, vector<1x1x1x2x128xf32>
    tpu.vector_store %arg7[%c0_19, %c0_20, %c0_21, %c0_22, %c0_23], %27 {strides = array<i32>} : memref<1x1x1x2x128xf32, #tpu.memory_space<vmem>>, vector<1x1x1x2x128xf32>,
    return
  }
  func.func @transform_0(%arg0: i32, %arg1: i32, %arg2: i32, %arg3: i32) -> (i32, i32, i32, i32, i32) {
    %c0_i32 = arith.constant 0 : i32
    %c0_i32_0 = arith.constant 0 : i32
    %c0_i32_1 = arith.constant 0 : i32
    return %arg0, %arg1, %c0_i32, %arg2, %c0_i32_0 : i32, i32, i32, i32, i32
  }
  func.func @transform_1(%arg0: i32, %arg1: i32, %arg2: i32, %arg3: i32) -> (i32, i32, i32) {
    %c0_i32 = arith.constant 0 : i32
    %c0_i32_0 = arith.constant 0 : i32
    %c0_i32_1 = arith.constant 0 : i32
    return %c0_i32, %c0_i32_0, %arg3 : i32, i32, i32
  }
  func.func @transform_2(%arg0: i32, %arg1: i32, %arg2: i32, %arg3: i32) -> (i32, i32, i32, i32) {
    %c0_i32 = arith.constant 0 : i32
    return %arg0, %arg1, %arg2, %arg3 : i32, i32, i32, i32
  }
  func.func @transform_3(%arg0: i32, %arg1: i32, %arg2: i32, %arg3: i32) -> (i32, i32, i32, i32, i32) {
    %c0_i32 = arith.constant 0 : i32
    %c0_i32_0 = arith.constant 0 : i32
    return %arg0, %arg1, %arg2, %c0_i32, %arg3 : i32, i32, i32, i32, i32
  }
}

</mosaic_0001>

<llo_original>
// kernel: tile.18
$region0: #{tile.18}
  #allocation0 [shape = 's32[1]{0}', space=sflag, size = 0x4, scoped, tag = 'scoped memory for tile.18']
  %s0 = inlined_call_operand.vmem [shape: f32[8], index: 0, kind: input, shape index: {}]
  %s1 = inlined_call_operand.vmem [shape: f32[4,8], index: 1, kind: output, shape index: {}]
  // Predicated region
  $region2: #{tile.18} parent=0 // pred_check
    _
  $region3: #{tile.18} parent=0 // pred_check_branch
    %3 = sbr.rel (0) target = $region5
  $region4: #{tile.18} parent=0 // pred_region
    _
  $region5: #{tile.18} parent=0 // pred_fallthru
    _
  %v4 = vld [vmem:[%s0] ss:$0 sm:$0xff]
  %5 = vst [vmem:[%s1] sm:$0xf] %v4

// kernel: tile.19
$region0: #{tile.19}
  %s0 = inlined_call_operand.vmem [shape: f32[4,8], index: 0, kind: input, shape index: {}]
  %s1 = inlined_call_operand.vmem [shape: f32[32], index: 1, kind: output, shape index: {}]
  $region1: #{tile.19} parent=0
    #allocation0 [shape = 'u8[4096]{0}', space=vmem, size = 0x1000, scoped, tag = 'scoped mem for output reshape']
    #allocation1 [shape = 'u8[4096]{0}', space=vmem, size = 0x1000, scoped, tag = 'scoped mem for input reshape']
    %s3 = sshll.u32 1, 4
    %s4 = ssub.s32 %s3, 1
    %v5 = vld [vmem:[%s0] sm:%s4]
    %6 = vst [vmem:[#allocation1] sm:%s4] %v5
    %v7 = vld [vmem:[#allocation1] sm:$0x1]
    %vm8 = vcmask 64512
    %9 = vst.msk [vmem:[#allocation0] sm:$0x1] %vm8, %v7
    %s10 = scalar_lea.vmem [#allocation1], 3
    %v11 = vld [vmem:[%s10] sm:$0x1]
    %12 = vrot.lane.b32.xlu0 %v11, 24
    %v13 = vpop.permute.xlu0 %12
    %vm14 = vcmask 261312
    %15 = vst.msk [vmem:[#allocation0] sm:$0x1] %vm14, %v13
    %s16 = scalar_lea.vmem [#allocation1], 2
    %v17 = vld [vmem:[%s16] sm:$0x1]
    %18 = vrot.lane.b32.xlu0 %v17, 16
    %v19 = vpop.permute.xlu0 %18
    %vm20 = vcmask 195712
    %21 = vst.msk [vmem:[#allocation0] sm:$0x1] %vm20, %v19
    %s22 = scalar_lea.vmem [#allocation1], 1
    %v23 = vld [vmem:[%s22] sm:$0x1]
    %24 = vrot.lane.b32.xlu0 %v23, 8
    %v25 = vpop.permute.xlu0 %24
    %vm26 = vcmask 130112
    %27 = vst.msk [vmem:[#allocation0] sm:$0x1] %vm26, %v25
    %s29 = sshll.u32 1, 1
    %s30 = ssub.s32 %s29, 1
    %v32 = vld [vmem:[#allocation0] sm:%s30]
    %s33 = sshll.u32 1, 1
    %s34 = ssub.s32 %s33, 1
    %35 = vst [vmem:[%s1] sm:%s34] %v32

// kernel: up_conv_forward.1
$region0: #{up_conv_forward.1}
  #allocation0 [shape = 'u32[]', space=smem, size = 0x4, offset = 0x4, fixed_abs, tag = 'smem constant byte address 0x4 - core index']
  #allocation1 [shape = 'u32[144,128]{1,0:T(1,128)}', space=vmem, size = 0x12000, scoped, tag = 'internal scratch']
  %s0 = inlined_call_operand.vmem [shape: f32[2,1,18,16,12], index: 0, kind: input, shape index: {}]
  %s1 = inlined_call_operand.vmem [shape: f32[3,12,128], index: 1, kind: input, shape index: {}]
  %s2 = inlined_call_operand.vmem [shape: f32[2,16,16,128], index: 2, kind: output, shape index: {0}]
  %s3 = inlined_call_operand.vmem [shape: f32[2,1,1,2,128], index: 3, kind: output, shape index: {1}]
  %4 = xla_tuple %s2, %s3
  %s5 = sld [smem:[#allocation0]]
  $region49: #{up_conv_forward.1} parent=0
    _
  %s7 = ssub.s32 1, %s5
  %s8 = scalar_select 0, %s7, %s5
  loop: start=0, step=1, limit=4
  $region2: #{up_conv_forward.1} parent=0 // loop_pre_header
    _
  $region3: #{up_conv_forward.1} parent=0 // loop_header
    %s10 = sphi 0, %s14
    %p11 = scmp.ge.s32.totalorder %s10, 4
    %s17 = sphi 0, %s43
    %s18 = sphi 0, %s39
    %s19 = sphi 0, %s35
    %s20 = sphi 0, %s31
    %s21 = sphi 0, %s17
    %s22 = sphi 0, %s18
    %s23 = sphi 0, %s19
    %s24 = sphi 0, %s20
    %s25 = sphi 0, %s21
    %s26 = sphi 0, %s22
    %s27 = sphi 0, %s23
    %s28 = sphi 0, %s24
    %s50 = sphi 0, %s52
    %s53 = sphi 0, %s50
    %s54 = sphi 0, %s53
    %s70 = sphi 0, %s54
    %s76 = sphi 0, %s78
    %s79 = sphi 0, %s76
    %s80 = sphi 0, %s79
    %s96 = sphi 0, %s80
    %s108 = sphi 0, %s110
    %s111 = sphi 0, %s108
    %s112 = sphi 0, %s111
    %s128 = sphi 0, %s112
    %s140 = sphi 0, %s142
    %s143 = sphi 0, %s140
    %s144 = sphi 0, %s143
    %s160 = sphi 0, %s144
  $region4: #{up_conv_forward.1} parent=0 // loop_header_branch
    %13 = sbr.rel (%p11) target = $region8
  $region5: #{up_conv_forward.1} parent=0 // loop_body
    %s15 = ssub.s32 %s10, 1
    %s16 = ssub.s32 %s10, 2
    %s29 = sadd.s32 1, %s20
    %p30 = scmp.ge.s32.totalorder %s29, 1
    %s31 = scalar_select %p30, 0, %s29
    %s32 = sadd.s32 1, %s19
    %s33 = scalar_select %p30, %s32, %s19
    %p34 = scmp.ge.s32.totalorder %s33, 1
    %s35 = scalar_select %p34, 0, %s33
    %s36 = sadd.s32 1, %s18
    %s37 = scalar_select %p34, %s36, %s18
    %p38 = scmp.ge.s32.totalorder %s37, 1
    %s39 = scalar_select %p38, 0, %s37
    %s40 = sadd.s32 1, %s17
    %s41 = scalar_select %p38, %s40, %s17
    %p42 = scmp.ge.s32.totalorder %s41, 2
    %s43 = scalar_select %p42, 0, %s41
    %s44 = ssub.s32 %s17, %s43
    %s45 = ssub.s32 %s18, %s39
    %s46 = sor.u32 %s44, %s45
    %s47 = ssub.s32 %s19, %s35
    %s48 = sor.u32 %s46, %s47
    %p49 = scmp.eq.s32.totalorder %s48, 0
    %s51 = sadd.s32 %s50, 1
    %s52 = scalar_select %p49, %s50, %s51
    %p55 = pneg %p49
    %p56 = scmp.eq.s32.totalorder %s10, 1
    %p57 = por %p55, %p56
    %p58 = scmp.ne.s32.totalorder %s50, %s53
    %p59 = scmp.eq.s32.totalorder %s10, 0
    %p60 = por %p58, %p59
    %p61 = scmp.ne.s32.totalorder %s50, %s53
    %p62 = scmp.eq.s32.totalorder %s15, 1
    %p63 = por %p61, %p62
    %p64 = scmp.ne.s32.totalorder %s53, %s54
    %p65 = scmp.eq.s32.totalorder %s15, 0
    %p66 = por %p64, %p65
    %p67 = scmp.ne.s32.totalorder %s53, %s54
    %p68 = scmp.eq.s32.totalorder %s16, 1
    %p69 = por %p67, %p68
    %p71 = scmp.ne.s32.totalorder %s54, %s70
    %p72 = scmp.eq.s32.totalorder %s16, 0
    %p73 = por %p71, %p72
    %s74 = ssub.s32 %s20, %s31
    %p75 = scmp.eq.s32.totalorder %s74, 0
    %s77 = sadd.s32 %s76, 1
    %s78 = scalar_select %p75, %s76, %s77
    %p81 = pneg %p75
    %p82 = scmp.eq.s32.totalorder %s10, 1
    %p83 = por %p81, %p82
    %p84 = scmp.ne.s32.totalorder %s76, %s79
    %p85 = scmp.eq.s32.totalorder %s10, 0
    %p86 = por %p84, %p85
    %p87 = scmp.ne.s32.totalorder %s76, %s79
    %p88 = scmp.eq.s32.totalorder %s15, 1
    %p89 = por %p87, %p88
    %p90 = scmp.ne.s32.totalorder %s79, %s80
    %p91 = scmp.eq.s32.totalorder %s15, 0
    %p92 = por %p90, %p91
    %p93 = scmp.ne.s32.totalorder %s79, %s80
    %p94 = scmp.eq.s32.totalorder %s16, 1
    %p95 = por %p93, %p94
    %p97 = scmp.ne.s32.totalorder %s80, %s96
    %p98 = scmp.eq.s32.totalorder %s16, 0
    %p99 = por %p97, %p98
    %s100 = ssub.s32 %s17, %s43
    %s101 = ssub.s32 %s18, %s39
    %s102 = sor.u32 %s100, %s101
    %s103 = ssub.s32 %s19, %s35
    %s104 = sor.u32 %s102, %s103
    %s105 = ssub.s32 %s20, %s31
    %s106 = sor.u32 %s104, %s105
    %p107 = scmp.eq.s32.totalorder %s106, 0
    %s109 = sadd.s32 %s108, 1
    %s110 = scalar_select %p107, %s108, %s109
    %p113 = pneg %p107
    %p114 = scmp.eq.s32.totalorder %s10, 1
    %p115 = por %p113, %p114
    %p116 = scmp.ne.s32.totalorder %s108, %s111
    %p117 = scmp.eq.s32.totalorder %s10, 0
    %p118 = por %p116, %p117
    %p119 = scmp.ne.s32.totalorder %s108, %s111
    %p120 = scmp.eq.s32.totalorder %s15, 1
    %p121 = por %p119, %p120
    %p122 = scmp.ne.s32.totalorder %s111, %s112
    %p123 = scmp.eq.s32.totalorder %s15, 0
    %p124 = por %p122, %p123
    %p125 = scmp.ne.s32.totalorder %s111, %s112
    %p126 = scmp.eq.s32.totalorder %s16, 1
    %p127 = por %p125, %p126
    %p129 = scmp.ne.s32.totalorder %s112, %s128
    %p130 = scmp.eq.s32.totalorder %s16, 0
    %p131 = por %p129, %p130
    %s132 = ssub.s32 %s17, %s43
    %s133 = ssub.s32 %s18, %s39
    %s134 = sor.u32 %s132, %s133
    %s135 = ssub.s32 %s19, %s35
    %s136 = sor.u32 %s134, %s135
    %s137 = ssub.s32 %s20, %s31
    %s138 = sor.u32 %s136, %s137
    %p139 = scmp.eq.s32.totalorder %s138, 0
    %s141 = sadd.s32 %s140, 1
    %s142 = scalar_select %p139, %s140, %s141
    %p145 = pneg %p139
    %p146 = scmp.eq.s32.totalorder %s10, 1
    %p147 = por %p145, %p146
    %p148 = scmp.ne.s32.totalorder %s140, %s143
    %p149 = scmp.eq.s32.totalorder %s10, 0
    %p150 = por %p148, %p149
    %p151 = scmp.ne.s32.totalorder %s140, %s143
    %p152 = scmp.eq.s32.totalorder %s15, 1
    %p153 = por %p151, %p152
    %p154 = scmp.ne.s32.totalorder %s143, %s144
    %p155 = scmp.eq.s32.totalorder %s15, 0
    %p156 = por %p154, %p155
    %p157 = scmp.ne.s32.totalorder %s143, %s144
    %p158 = scmp.eq.s32.totalorder %s16, 1
    %p159 = por %p157, %p158
    %p161 = scmp.ne.s32.totalorder %s144, %s160
    %p162 = scmp.eq.s32.totalorder %s16, 0
    %p163 = por %p161, %p162
    %p164 = scmp.le.s32.totalorder 1, %s10
    %p165 = scmp.lt.s32.totalorder %s10, 3
    %p166 = pnand %p164, %p165
    %p167 = pneg %p166
    // Predicated region
    $region9: #{up_conv_forward.1} parent=5 // pred_check
      _
    $region10: #{up_conv_forward.1} parent=5 // pred_check_branch
      %169 = sbr.rel (%p166) target = $region12
    $region11: #{up_conv_forward.1} parent=5 // pred_region
      %s170 = ssub.s32 %s10, 1
      // Predicated region
      $region13: #{up_conv_forward.1} parent=11 // pred_check
        %p171 = pneg %p92
      $region14: #{up_conv_forward.1} parent=11 // pred_check_branch
        %173 = sbr.rel (%p171) target = $region16
      $region15: #{up_conv_forward.1} parent=11 // pred_region
        %p174 = scmp.lt.s32.totalorder %s24, 0
        %s175 = scalar_select %p174, %s24, 0
        %s176 = smul.addr %s175, 8
        %s177 = scalar_lea.vmem %s1, %s176
      $region16: #{up_conv_forward.1} parent=11 // pred_fallthru
        _
    $region12: #{up_conv_forward.1} parent=5 // pred_fallthru
      _
    %p178 = scmp.lt.s32.totalorder %s10, 2
    // Predicated region
    $region17: #{up_conv_forward.1} parent=5 // pred_check
      %p179 = pneg %p178
    $region18: #{up_conv_forward.1} parent=5 // pred_check_branch
      %181 = sbr.rel (%p179) target = $region20
    $region19: #{up_conv_forward.1} parent=5 // pred_region
      // Predicated region
      $region21: #{up_conv_forward.1} parent=19 // pred_check
        %p182 = pneg %p60
      $region22: #{up_conv_forward.1} parent=19 // pred_check_branch
        %184 = sbr.rel (%p182) target = $region24
      $region23: #{up_conv_forward.1} parent=19 // pred_region
        %s185 = smul.u32 2, %s19
        %p186 = scmp.lt.s32.totalorder %s17, 1
        %s187 = scalar_select %p186, %s17, 1
        %p188 = scmp.lt.s32.totalorder %s18, 0
        %s189 = scalar_select %p188, %s18, 0
        %p190 = scmp.lt.s32.totalorder %s185, 1
        %s191 = scalar_select %p190, %s185, 1
        %s192 = smul.addr %s189, 36
        %s193 = sadd.s32 %s191, %s192
        %s194 = smul.addr %s187, 36
        %s195 = sadd.s32 %s193, %s194
        %s196 = smul.addr %s195, 8
        %s197 = scalar_lea.vmem %s0, %s196
        %s198 = smul.u32 2, %s19
      $region24: #{up_conv_forward.1} parent=19 // pred_fallthru
        _
    $region20: #{up_conv_forward.1} parent=5 // pred_fallthru
      _
    %p199 = scmp.le.s32.totalorder 1, %s10
    %p200 = scmp.lt.s32.totalorder %s10, 3
    %p201 = pnand %p199, %p200
    %p202 = pneg %p201
    // Predicated region
    $region25: #{up_conv_forward.1} parent=5 // pred_check
      _
    $region26: #{up_conv_forward.1} parent=5 // pred_check_branch
      %204 = sbr.rel (%p201) target = $region28
    $region27: #{up_conv_forward.1} parent=5 // pred_region
      %s205 = ssub.s32 %s10, 1
      %s206 = smul.u32 2, %s23
      %p207 = scmp.lt.s32.totalorder %s21, 1
      %s208 = scalar_select %p207, %s21, 1
      %p209 = scmp.lt.s32.totalorder %s22, 0
      %s210 = scalar_select %p209, %s22, 0
      %p211 = scmp.lt.s32.totalorder %s206, 1
      %s212 = scalar_select %p211, %s206, 1
      %s213 = smul.addr %s210, 36
      %s214 = sadd.s32 %s212, %s213
      %s215 = smul.addr %s208, 36
      %s216 = sadd.s32 %s214, %s215
      %s217 = smul.addr %s216, 8
      %s218 = scalar_lea.vmem %s0, %s217
      %p219 = pneg %p66
      %p220 = pneg %p63
      %p221 = scmp.lt.s32.totalorder %s24, 0
      %s222 = scalar_select %p221, %s24, 0
      %s223 = smul.addr %s222, 8
      %s224 = scalar_lea.vmem %s1, %s223
      %p225 = pneg %p92
      %p226 = pneg %p89
      %p227 = pneg %p124
      %p228 = pneg %p121
      %s229 = smul.u32 16, %s22
      %s230 = smul.u32 2, %s23
      %p231 = scmp.lt.s32.totalorder %s21, 1
      %s232 = scalar_select %p231, %s21, 1
      %p233 = scmp.lt.s32.totalorder %s229, 15
      %s234 = scalar_select %p233, %s229, 15
      %p235 = scmp.lt.s32.totalorder %s230, 1
      %s236 = scalar_select %p235, %s230, 1
      %p237 = scmp.lt.s32.totalorder %s24, 0
      %s238 = scalar_select %p237, %s24, 0
      %s239 = sadd.s32 %s238, %s236
      %s240 = smul.addr %s234, 2
      %s241 = sadd.s32 %s239, %s240
      %s242 = smul.addr %s232, 32
      %s243 = sadd.s32 %s241, %s242
      %s244 = smul.addr %s243, 8
      %s245 = scalar_lea.vmem %s2, %s244
      %p246 = pneg %p156
      %p247 = pneg %p153
      %p248 = scmp.lt.s32.totalorder %s21, 1
      %s249 = scalar_select %p248, %s21, 1
      %p250 = scmp.lt.s32.totalorder %s22, 0
      %s251 = scalar_select %p250, %s22, 0
      %p252 = scmp.lt.s32.totalorder %s23, 0
      %s253 = scalar_select %p252, %s23, 0
      %p254 = scmp.lt.s32.totalorder %s24, 0
      %s255 = scalar_select %p254, %s24, 0
      %s256 = sadd.s32 %s255, %s253
      %s257 = sadd.s32 %s256, %s251
      %s258 = sadd.s32 %s257, %s249
      %s259 = smul.addr %s258, 2
      %s260 = scalar_lea.vmem %s3, %s259
      %s261 = smul.u32 2, %s23
      %p262 = scmp.lt.s32.totalorder %s21, 1
      %s263 = scalar_select %p262, %s21, 1
      %p264 = scmp.lt.s32.totalorder %s22, 0
      %s265 = scalar_select %p264, %s22, 0
      %p266 = scmp.lt.s32.totalorder %s261, 1
      %s267 = scalar_select %p266, %s261, 1
      %s268 = smul.addr %s265, 36
      %s269 = sadd.s32 %s267, %s268
      %s270 = smul.addr %s263, 36
      %s271 = sadd.s32 %s269, %s270
      %s272 = smul.addr %s271, 8
      %s273 = scalar_lea.vmem %s0, %s272
      %s274 = smul.u32 2, %s23
      %p275 = scmp.lt.s32.totalorder %s24, 0
      %s276 = scalar_select %p275, %s24, 0
      %s277 = smul.addr %s276, 8
      %s278 = scalar_lea.vmem %s1, %s277
      %s279 = smul.u32 16, %s22
      %s280 = smul.u32 2, %s23
      %p281 = scmp.lt.s32.totalorder %s21, 1
      %s282 = scalar_select %p281, %s21, 1
      %p283 = scmp.lt.s32.totalorder %s279, 15
      %s284 = scalar_select %p283, %s279, 15
      %p285 = scmp.lt.s32.totalorder %s280, 1
      %s286 = scalar_select %p285, %s280, 1
      %p287 = scmp.lt.s32.totalorder %s24, 0
      %s288 = scalar_select %p287, %s24, 0
      %s289 = sadd.s32 %s288, %s286
      %s290 = smul.addr %s284, 2
      %s291 = sadd.s32 %s289, %s290
      %s292 = smul.addr %s282, 32
      %s293 = sadd.s32 %s291, %s292
      %s294 = smul.addr %s293, 8
      %s295 = scalar_lea.vmem %s2, %s294
      %s296 = smul.u32 16, %s22
      %s297 = smul.u32 2, %s23
      %p298 = scmp.lt.s32.totalorder %s21, 1
      %s299 = scalar_select %p298, %s21, 1
      %p300 = scmp.lt.s32.totalorder %s22, 0
      %s301 = scalar_select %p300, %s22, 0
      %p302 = scmp.lt.s32.totalorder %s23, 0
      %s303 = scalar_select %p302, %s23, 0
      %p304 = scmp.lt.s32.totalorder %s24, 0
      %s305 = scalar_select %p304, %s24, 0
      %s306 = sadd.s32 %s305, %s303
      %s307 = sadd.s32 %s306, %s301
      %s308 = sadd.s32 %s307, %s299
      %s309 = smul.addr %s308, 2
      %s310 = scalar_lea.vmem %s3, %s309
      %v311 = vld [vmem:[%s273] sm:$0xff]
      %v312 = vld [vmem:[%s273 + $0x8] sm:$0xff]
      %v313 = vld [vmem:[%s273 + $0x10] sm:$0xff]
      %v314 = vld [vmem:[%s273 + $0x18] sm:$0xff]
      %v315 = vld [vmem:[%s273 + $0x20] sm:$0xff]
      %v316 = vld [vmem:[%s273 + $0x28] sm:$0xff]
      %v317 = vld [vmem:[%s273 + $0x30] sm:$0xff]
      %v318 = vld [vmem:[%s273 + $0x38] sm:$0xff]
      %v319 = vld [vmem:[%s273 + $0x40] sm:$0xff]
      %v320 = vld [vmem:[%s273 + $0x48] sm:$0xff]
      %v321 = vld [vmem:[%s273 + $0x50] sm:$0xff]
      %v322 = vld [vmem:[%s273 + $0x58] sm:$0xff]
      %v323 = vld [vmem:[%s273 + $0x60] sm:$0xff]
      %v324 = vld [vmem:[%s273 + $0x68] sm:$0xff]
      %v325 = vld [vmem:[%s273 + $0x70] sm:$0xff]
      %v326 = vld [vmem:[%s273 + $0x78] sm:$0xff]
      %v327 = vld [vmem:[%s273 + $0x80] sm:$0xff]
      %v328 = vld [vmem:[%s273 + $0x88] sm:$0xff]
      %v329 = vld [vmem:[%s273 + $0x90] sm:$0xff]
      %v330 = vld [vmem:[%s273 + $0x98] sm:$0xff]
      %v331 = vld [vmem:[%s273 + $0xa0] sm:$0xff]
      %v332 = vld [vmem:[%s273 + $0xa8] sm:$0xff]
      %v333 = vld [vmem:[%s273 + $0xb0] sm:$0xff]
      %v334 = vld [vmem:[%s273 + $0xb8] sm:$0xff]
      %v335 = vld [vmem:[%s273 + $0xc0] sm:$0xff]
      %v336 = vld [vmem:[%s273 + $0xc8] sm:$0xff]
      %v337 = vld [vmem:[%s273 + $0xd0] sm:$0xff]
      %v338 = vld [vmem:[%s273 + $0xd8] sm:$0xff]
      %v339 = vld [vmem:[%s273 + $0xe0] sm:$0xff]
      %v340 = vld [vmem:[%s273 + $0xe8] sm:$0xff]
      %v341 = vld [vmem:[%s273 + $0xf0] sm:$0xff]
      %v342 = vld [vmem:[%s273 + $0xf8] sm:$0xff]
      %v343 = vld [vmem:[%s273 + $0x100] sm:$0xff]
      %v344 = vld [vmem:[%s273 + $0x108] sm:$0xff]
      %v345 = vld [vmem:[%s273 + $0x110] sm:$0xff]
      %v346 = vld [vmem:[%s273 + $0x118] sm:$0xff]
      %v347 = vld [vmem:[%s278] sm:$0xff]
      %v348 = vld [vmem:[%s278 + $0x8] sm:$0xf]
      %s349 = scalar_lea.vmem %s278, 16
      %v350 = vld [vmem:[%s349] sm:$0xff]
      %v351 = vld [vmem:[%s349 + $0x8] sm:$0xf]
      %vm352 = vcmask 97280
      %v354 = vsel %vm352, %v313, 0
      %v357 = vsel %vm352, %v314, 0
      %v360 = vsel %vm352, %v315, 0
      %v363 = vsel %vm352, %v316, 0
      %v366 = vsel %vm352, %v317, 0
      %v369 = vsel %vm352, %v318, 0
      %v372 = vsel %vm352, %v319, 0
      %v375 = vsel %vm352, %v320, 0
      %v378 = vsel %vm352, %v321, 0
      %v381 = vsel %vm352, %v322, 0
      %v384 = vsel %vm352, %v323, 0
      %v387 = vsel %vm352, %v324, 0
      %v390 = vsel %vm352, %v325, 0
      %v393 = vsel %vm352, %v326, 0
      %v396 = vsel %vm352, %v327, 0
      %v399 = vsel %vm352, %v328, 0
      %v402 = vsel %vm352, %v329, 0
      %v405 = vsel %vm352, %v330, 0
      %v408 = vsel %vm352, %v331, 0
      %v411 = vsel %vm352, %v332, 0
      %v414 = vsel %vm352, %v333, 0
      %v417 = vsel %vm352, %v334, 0
      %v420 = vsel %vm352, %v335, 0
      %v423 = vsel %vm352, %v336, 0
      %v426 = vsel %vm352, %v337, 0
      %v429 = vsel %vm352, %v338, 0
      %v432 = vsel %vm352, %v339, 0
      %v435 = vsel %vm352, %v340, 0
      %v438 = vsel %vm352, %v341, 0
      %v441 = vsel %vm352, %v342, 0
      %v444 = vsel %vm352, %v343, 0
      %v447 = vsel %vm352, %v344, 0
      %vm449 = vcmask 1043456
      %v451 = vsel %vm449, %v351, 0
      %453 = vmatprep.subr.mxu0 0.0
      %454 = vmatpush1.msra.mxu0 0.0
      %455 = vmatprep.subr.mxu0 0.0
      %456 = vmatpush1.msra.mxu0 0.0
      %457 = vmatprep.subr.mxu0 0.0
      %458 = vmatpush1.msra.mxu0 0.0
      %459 = vmatprep.subr.mxu0 0.0
      %460 = vmatpush1.msra.mxu0 0.0
      %461 = vmatprep.subr.mxu0 0.0
      %462 = vmatpush1.msra.mxu0 0.0
      %463 = vmatprep.subr.mxu0 0.0
      %464 = vmatpush1.msra.mxu0 0.0
      %465 = vmatprep.subr.mxu0 0.0
      %466 = vmatpush1.msra.mxu0 0.0
      %467 = vmatprep.subr.mxu0 0.0
      %468 = vmatpush1.msra.mxu0 0.0
      %469 = vmatprep.subr.mxu0 0.0
      %470 = vmatpush1.msra.mxu0 0.0
      %471 = vmatprep.subr.mxu0 0.0
      %472 = vmatpush1.msra.mxu0 0.0
      %473 = vmatprep.subr.mxu0 0.0
      %474 = vmatpush1.msra.mxu0 0.0
      %475 = vmatprep.subr.mxu0 0.0
      %476 = vmatpush1.msra.mxu0 0.0
      %477 = vmatprep.subr.mxu0 0.0
      %478 = vmatpush1.msra.mxu0 0.0
      %479 = vmatprep.subr.mxu0 0.0
      %480 = vmatpush1.msra.mxu0 0.0
      %481 = vmatprep.subr.mxu0 0.0
      %482 = vmatpush1.msra.mxu0 %v451
      %483 = vmatprep.subr.mxu0 0.0
      %484 = vmatpush1.msra.mxu0 %v350
      %485 = vmatprep.subr.mxu0 0.0
      %486 = vmatpush2.msra.mxu0 0.0
      %487 = vmatprep.subr.mxu0 0.0
      %488 = vmatpush2.msra.mxu0 0.0
      %489 = vmatprep.subr.mxu0 0.0
      %490 = vmatpush2.msra.mxu0 0.0
      %491 = vmatprep.subr.mxu0 0.0
      %492 = vmatpush2.msra.mxu0 0.0
      %493 = vmatprep.subr.mxu0 0.0
      %494 = vmatpush2.msra.mxu0 0.0
      %495 = vmatprep.subr.mxu0 0.0
      %496 = vmatpush2.msra.mxu0 0.0
      %497 = vmatprep.subr.mxu0 0.0
      %498 = vmatpush2.msra.mxu0 0.0
      %499 = vmatprep.subr.mxu0 0.0
      %500 = vmatpush2.msra.mxu0 0.0
      %501 = vmatprep.subr.mxu0 0.0
      %502 = vmatpush2.msra.mxu0 0.0
      %503 = vmatprep.subr.mxu0 0.0
      %504 = vmatpush2.msra.mxu0 0.0
      %505 = vmatprep.subr.mxu0 0.0
      %506 = vmatpush2.msra.mxu0 0.0
      %507 = vmatprep.subr.mxu0 0.0
      %508 = vmatpush2.msra.mxu0 0.0
      %509 = vmatprep.subr.mxu0 0.0
      %510 = vmatpush2.msra.mxu0 0.0
      %511 = vmatprep.subr.mxu0 0.0
      %512 = vmatpush2.msra.mxu0 0.0
      %513 = vmatprep.subr.mxu0 0.0
      %514 = vmatpush2.msra.mxu0 0.0
      %515 = vmatprep.subr.mxu0 0.0
      %516 = vmatpush2.msra.mxu0 0.0
      %517 = vmatprep.mubr.f32.mxu0 0.0
      %518 = vmatmul.mubr.f32.gmra.mxu0 %v354
      %v519 = vpop.f32.mrf.mxu0
      %v520 = vadd.f32 0.0, %v519
      %v521 = vpop.f32.mrf.mxu0
      %522 = vmatprep.mubr.f32.mxu0 0.0
      %523 = vmatmul.mubr.f32.gmra.mxu0 %v357
      %v524 = vpop.f32.mrf.mxu0
      %v525 = vadd.f32 0.0, %v524
      %v526 = vpop.f32.mrf.mxu0
      %527 = vmatprep.mubr.f32.mxu0 0.0
      %528 = vmatmul.mubr.f32.gmra.mxu0 %v360
      %v529 = vpop.f32.mrf.mxu0
      %v530 = vadd.f32 0.0, %v529
      %v531 = vpop.f32.mrf.mxu0
      %532 = vmatprep.mubr.f32.mxu0 0.0
      %533 = vmatmul.mubr.f32.gmra.mxu0 %v363
      %v534 = vpop.f32.mrf.mxu0
      %v535 = vadd.f32 0.0, %v534
      %v536 = vpop.f32.mrf.mxu0
      %537 = vmatprep.mubr.f32.mxu0 0.0
      %538 = vmatmul.mubr.f32.gmra.mxu0 %v366
      %v539 = vpop.f32.mrf.mxu0
      %v540 = vadd.f32 0.0, %v539
      %v541 = vpop.f32.mrf.mxu0
      %542 = vmatprep.mubr.f32.mxu0 0.0
      %543 = vmatmul.mubr.f32.gmra.mxu0 %v369
      %v544 = vpop.f32.mrf.mxu0
      %v545 = vadd.f32 0.0, %v544
      %v546 = vpop.f32.mrf.mxu0
      %547 = vmatprep.mubr.f32.mxu0 0.0
      %548 = vmatmul.mubr.f32.gmra.mxu0 %v372
      %v549 = vpop.f32.mrf.mxu0
      %v550 = vadd.f32 0.0, %v549
      %v551 = vpop.f32.mrf.mxu0
      %552 = vmatprep.mubr.f32.mxu0 0.0
      %553 = vmatmul.mubr.f32.gmra.mxu0 %v375
      %v554 = vpop.f32.mrf.mxu0
      %v555 = vadd.f32 0.0, %v554
      %v556 = vpop.f32.mrf.mxu0
      %557 = vmatprep.mubr.f32.mxu0 0.0
      %558 = vmatmul.mubr.f32.gmra.mxu0 %v378
      %v559 = vpop.f32.mrf.mxu0
      %v560 = vadd.f32 0.0, %v559
      %v561 = vpop.f32.mrf.mxu0
      %562 = vmatprep.mubr.f32.mxu0 0.0
      %563 = vmatmul.mubr.f32.gmra.mxu0 %v381
      %v564 = vpop.f32.mrf.mxu0
      %v565 = vadd.f32 0.0, %v564
      %v566 = vpop.f32.mrf.mxu0
      %567 = vmatprep.mubr.f32.mxu0 0.0
      %568 = vmatmul.mubr.f32.gmra.mxu0 %v384
      %v569 = vpop.f32.mrf.mxu0
      %v570 = vadd.f32 0.0, %v569
      %v571 = vpop.f32.mrf.mxu0
      %572 = vmatprep.mubr.f32.mxu0 0.0
      %573 = vmatmul.mubr.f32.gmra.mxu0 %v387
      %v574 = vpop.f32.mrf.mxu0
      %v575 = vadd.f32 0.0, %v574
      %v576 = vpop.f32.mrf.mxu0
      %577 = vmatprep.mubr.f32.mxu0 0.0
      %578 = vmatmul.mubr.f32.gmra.mxu0 %v390
      %v579 = vpop.f32.mrf.mxu0
      %v580 = vadd.f32 0.0, %v579
      %v581 = vpop.f32.mrf.mxu0
      %582 = vmatprep.mubr.f32.mxu0 0.0
      %583 = vmatmul.mubr.f32.gmra.mxu0 %v393
      %v584 = vpop.f32.mrf.mxu0
      %v585 = vadd.f32 0.0, %v584
      %v586 = vpop.f32.mrf.mxu0
      %587 = vmatprep.mubr.f32.mxu0 0.0
      %588 = vmatmul.mubr.f32.gmra.mxu0 %v396
      %v589 = vpop.f32.mrf.mxu0
      %v590 = vadd.f32 0.0, %v589
      %v591 = vpop.f32.mrf.mxu0
      %592 = vmatprep.mubr.f32.mxu0 0.0
      %593 = vmatmul.mubr.f32.gmra.mxu0 %v399
      %v594 = vpop.f32.mrf.mxu0
      %v595 = vadd.f32 0.0, %v594
      %v596 = vpop.f32.mrf.mxu0
      %597 = vmatprep.mubr.f32.mxu0 0.0
      %598 = vmatmul.mubr.f32.gmra.mxu0 %v402
      %v599 = vpop.f32.mrf.mxu0
      %v600 = vadd.f32 0.0, %v599
      %v601 = vpop.f32.mrf.mxu0
      %602 = vmatprep.mubr.f32.mxu0 0.0
      %603 = vmatmul.mubr.f32.gmra.mxu0 %v405
      %v604 = vpop.f32.mrf.mxu0
      %v605 = vadd.f32 0.0, %v604
      %v606 = vpop.f32.mrf.mxu0
      %607 = vmatprep.mubr.f32.mxu0 0.0
      %608 = vmatmul.mubr.f32.gmra.mxu0 %v408
      %v609 = vpop.f32.mrf.mxu0
      %v610 = vadd.f32 0.0, %v609
      %v611 = vpop.f32.mrf.mxu0
      %612 = vmatprep.mubr.f32.mxu0 0.0
      %613 = vmatmul.mubr.f32.gmra.mxu0 %v411
      %v614 = vpop.f32.mrf.mxu0
      %v615 = vadd.f32 0.0, %v614
      %v616 = vpop.f32.mrf.mxu0
      %617 = vmatprep.mubr.f32.mxu0 0.0
      %618 = vmatmul.mubr.f32.gmra.mxu0 %v414
      %v619 = vpop.f32.mrf.mxu0
      %v620 = vadd.f32 0.0, %v619
      %v621 = vpop.f32.mrf.mxu0
      %622 = vmatprep.mubr.f32.mxu0 0.0
      %623 = vmatmul.mubr.f32.gmra.mxu0 %v417
      %v624 = vpop.f32.mrf.mxu0
      %v625 = vadd.f32 0.0, %v624
      %v626 = vpop.f32.mrf.mxu0
      %627 = vmatprep.mubr.f32.mxu0 0.0
      %628 = vmatmul.mubr.f32.gmra.mxu0 %v420
      %v629 = vpop.f32.mrf.mxu0
      %v630 = vadd.f32 0.0, %v629
      %v631 = vpop.f32.mrf.mxu0
      %632 = vmatprep.mubr.f32.mxu0 0.0
      %633 = vmatmul.mubr.f32.gmra.mxu0 %v423
      %v634 = vpop.f32.mrf.mxu0
      %v635 = vadd.f32 0.0, %v634
      %v636 = vpop.f32.mrf.mxu0
      %637 = vmatprep.mubr.f32.mxu0 0.0
      %638 = vmatmul.mubr.f32.gmra.mxu0 %v426
      %v639 = vpop.f32.mrf.mxu0
      %v640 = vadd.f32 0.0, %v639
      %v641 = vpop.f32.mrf.mxu0
      %642 = vmatprep.mubr.f32.mxu0 0.0
      %643 = vmatmul.mubr.f32.gmra.mxu0 %v429
      %v644 = vpop.f32.mrf.mxu0
      %v645 = vadd.f32 0.0, %v644
      %v646 = vpop.f32.mrf.mxu0
      %647 = vmatprep.mubr.f32.mxu0 0.0
      %648 = vmatmul.mubr.f32.gmra.mxu0 %v432
      %v649 = vpop.f32.mrf.mxu0
      %v650 = vadd.f32 0.0, %v649
      %v651 = vpop.f32.mrf.mxu0
      %652 = vmatprep.mubr.f32.mxu0 0.0
      %653 = vmatmul.mubr.f32.gmra.mxu0 %v435
      %v654 = vpop.f32.mrf.mxu0
      %v655 = vadd.f32 0.0, %v654
      %v656 = vpop.f32.mrf.mxu0
      %657 = vmatprep.mubr.f32.mxu0 0.0
      %658 = vmatmul.mubr.f32.gmra.mxu0 %v438
      %v659 = vpop.f32.mrf.mxu0
      %v660 = vadd.f32 0.0, %v659
      %v661 = vpop.f32.mrf.mxu0
      %662 = vmatprep.mubr.f32.mxu0 0.0
      %663 = vmatmul.mubr.f32.gmra.mxu0 %v441
      %v664 = vpop.f32.mrf.mxu0
      %v665 = vadd.f32 0.0, %v664
      %v666 = vpop.f32.mrf.mxu0
      %667 = vmatprep.mubr.f32.mxu0 0.0
      %668 = vmatmul.mubr.f32.gmra.mxu0 %v444
      %v669 = vpop.f32.mrf.mxu0
      %v670 = vadd.f32 0.0, %v669
      %v671 = vpop.f32.mrf.mxu0
      %672 = vmatprep.mubr.f32.mxu0 0.0
      %673 = vmatmul.mubr.f32.gmra.mxu0 %v447
      %v674 = vpop.f32.mrf.mxu0
      %v675 = vadd.f32 0.0, %v674
      %v676 = vpop.f32.mrf.mxu0
      %677 = vdwg.mxu0
      %v679 = vsel %vm352, %v311, 0
      %v682 = vsel %vm352, %v312, 0
      %v685 = vsel %vm449, %v348, 0
      %687 = vmatprep.subr.mxu0 0.0
      %688 = vmatpush1.msra.mxu0 0.0
      %689 = vmatprep.subr.mxu0 0.0
      %690 = vmatpush1.msra.mxu0 0.0
      %691 = vmatprep.subr.mxu0 0.0
      %692 = vmatpush1.msra.mxu0 0.0
      %693 = vmatprep.subr.mxu0 0.0
      %694 = vmatpush1.msra.mxu0 0.0
      %695 = vmatprep.subr.mxu0 0.0
      %696 = vmatpush1.msra.mxu0 0.0
      %697 = vmatprep.subr.mxu0 0.0
      %698 = vmatpush1.msra.mxu0 0.0
      %699 = vmatprep.subr.mxu0 0.0
      %700 = vmatpush1.msra.mxu0 0.0
      %701 = vmatprep.subr.mxu0 0.0
      %702 = vmatpush1.msra.mxu0 0.0
      %703 = vmatprep.subr.mxu0 0.0
      %704 = vmatpush1.msra.mxu0 0.0
      %705 = vmatprep.subr.mxu0 0.0
      %706 = vmatpush1.msra.mxu0 0.0
      %707 = vmatprep.subr.mxu0 0.0
      %708 = vmatpush1.msra.mxu0 0.0
      %709 = vmatprep.subr.mxu0 0.0
      %710 = vmatpush1.msra.mxu0 0.0
      %711 = vmatprep.subr.mxu0 0.0
      %712 = vmatpush1.msra.mxu0 0.0
      %713 = vmatprep.subr.mxu0 0.0
      %714 = vmatpush1.msra.mxu0 0.0
      %715 = vmatprep.subr.mxu0 0.0
      %716 = vmatpush1.msra.mxu0 %v685
      %717 = vmatprep.subr.mxu0 0.0
      %718 = vmatpush1.msra.mxu0 %v347
      %719 = vmatprep.subr.mxu0 0.0
      %720 = vmatpush2.msra.mxu0 0.0
      %721 = vmatprep.subr.mxu0 0.0
      %722 = vmatpush2.msra.mxu0 0.0
      %723 = vmatprep.subr.mxu0 0.0
      %724 = vmatpush2.msra.mxu0 0.0
      %725 = vmatprep.subr.mxu0 0.0
      %726 = vmatpush2.msra.mxu0 0.0
      %727 = vmatprep.subr.mxu0 0.0
      %728 = vmatpush2.msra.mxu0 0.0
      %729 = vmatprep.subr.mxu0 0.0
      %730 = vmatpush2.msra.mxu0 0.0
      %731 = vmatprep.subr.mxu0 0.0
      %732 = vmatpush2.msra.mxu0 0.0
      %733 = vmatprep.subr.mxu0 0.0
      %734 = vmatpush2.msra.mxu0 0.0
      %735 = vmatprep.subr.mxu0 0.0
      %736 = vmatpush2.msra.mxu0 0.0
      %737 = vmatprep.subr.mxu0 0.0
      %738 = vmatpush2.msra.mxu0 0.0
      %739 = vmatprep.subr.mxu0 0.0
      %740 = vmatpush2.msra.mxu0 0.0
      %741 = vmatprep.subr.mxu0 0.0
      %742 = vmatpush2.msra.mxu0 0.0
      %743 = vmatprep.subr.mxu0 0.0
      %744 = vmatpush2.msra.mxu0 0.0
      %745 = vmatprep.subr.mxu0 0.0
      %746 = vmatpush2.msra.mxu0 0.0
      %747 = vmatprep.subr.mxu0 0.0
      %748 = vmatpush2.msra.mxu0 0.0
      %749 = vmatprep.subr.mxu0 0.0
      %750 = vmatpush2.msra.mxu0 0.0
      %751 = vmatprep.mubr.f32.mxu0 0.0
      %752 = vmatmul.mubr.f32.gmra.mxu0 %v679
      %v753 = vpop.f32.mrf.mxu0
      %v754 = vadd.f32 %v520, %v753
      %v755 = vpop.f32.mrf.mxu0
      %756 = vmatprep.mubr.f32.mxu0 0.0
      %757 = vmatmul.mubr.f32.gmra.mxu0 %v682
      %v758 = vpop.f32.mrf.mxu0
      %v759 = vadd.f32 %v525, %v758
      %v760 = vpop.f32.mrf.mxu0
      %761 = vmatprep.mubr.f32.mxu0 0.0
      %762 = vmatmul.mubr.f32.gmra.mxu0 %v354
      %v763 = vpop.f32.mrf.mxu0
      %v764 = vadd.f32 %v530, %v763
      %v765 = vpop.f32.mrf.mxu0
      %766 = vmatprep.mubr.f32.mxu0 0.0
      %767 = vmatmul.mubr.f32.gmra.mxu0 %v357
      %v768 = vpop.f32.mrf.mxu0
      %v769 = vadd.f32 %v535, %v768
      %v770 = vpop.f32.mrf.mxu0
      %771 = vmatprep.mubr.f32.mxu0 0.0
      %772 = vmatmul.mubr.f32.gmra.mxu0 %v360
      %v773 = vpop.f32.mrf.mxu0
      %v774 = vadd.f32 %v540, %v773
      %v775 = vpop.f32.mrf.mxu0
      %776 = vmatprep.mubr.f32.mxu0 0.0
      %777 = vmatmul.mubr.f32.gmra.mxu0 %v363
      %v778 = vpop.f32.mrf.mxu0
      %v779 = vadd.f32 %v545, %v778
      %v780 = vpop.f32.mrf.mxu0
      %781 = vmatprep.mubr.f32.mxu0 0.0
      %782 = vmatmul.mubr.f32.gmra.mxu0 %v366
      %v783 = vpop.f32.mrf.mxu0
      %v784 = vadd.f32 %v550, %v783
      %v785 = vpop.f32.mrf.mxu0
      %786 = vmatprep.mubr.f32.mxu0 0.0
      %787 = vmatmul.mubr.f32.gmra.mxu0 %v369
      %v788 = vpop.f32.mrf.mxu0
      %v789 = vadd.f32 %v555, %v788
      %v790 = vpop.f32.mrf.mxu0
      %791 = vmatprep.mubr.f32.mxu0 0.0
      %792 = vmatmul.mubr.f32.gmra.mxu0 %v372
      %v793 = vpop.f32.mrf.mxu0
      %v794 = vadd.f32 %v560, %v793
      %v795 = vpop.f32.mrf.mxu0
      %796 = vmatprep.mubr.f32.mxu0 0.0
      %797 = vmatmul.mubr.f32.gmra.mxu0 %v375
      %v798 = vpop.f32.mrf.mxu0
      %v799 = vadd.f32 %v565, %v798
      %v800 = vpop.f32.mrf.mxu0
      %801 = vmatprep.mubr.f32.mxu0 0.0
      %802 = vmatmul.mubr.f32.gmra.mxu0 %v378
      %v803 = vpop.f32.mrf.mxu0
      %v804 = vadd.f32 %v570, %v803
      %v805 = vpop.f32.mrf.mxu0
      %806 = vmatprep.mubr.f32.mxu0 0.0
      %807 = vmatmul.mubr.f32.gmra.mxu0 %v381
      %v808 = vpop.f32.mrf.mxu0
      %v809 = vadd.f32 %v575, %v808
      %v810 = vpop.f32.mrf.mxu0
      %811 = vmatprep.mubr.f32.mxu0 0.0
      %812 = vmatmul.mubr.f32.gmra.mxu0 %v384
      %v813 = vpop.f32.mrf.mxu0
      %v814 = vadd.f32 %v580, %v813
      %v815 = vpop.f32.mrf.mxu0
      %816 = vmatprep.mubr.f32.mxu0 0.0
      %817 = vmatmul.mubr.f32.gmra.mxu0 %v387
      %v818 = vpop.f32.mrf.mxu0
      %v819 = vadd.f32 %v585, %v818
      %v820 = vpop.f32.mrf.mxu0
      %821 = vmatprep.mubr.f32.mxu0 0.0
      %822 = vmatmul.mubr.f32.gmra.mxu0 %v390
      %v823 = vpop.f32.mrf.mxu0
      %v824 = vadd.f32 %v590, %v823
      %v825 = vpop.f32.mrf.mxu0
      %826 = vmatprep.mubr.f32.mxu0 0.0
      %827 = vmatmul.mubr.f32.gmra.mxu0 %v393
      %v828 = vpop.f32.mrf.mxu0
      %v829 = vadd.f32 %v595, %v828
      %v830 = vpop.f32.mrf.mxu0
      %831 = vmatprep.mubr.f32.mxu0 0.0
      %832 = vmatmul.mubr.f32.gmra.mxu0 %v396
      %v833 = vpop.f32.mrf.mxu0
      %v834 = vadd.f32 %v600, %v833
      %v835 = vpop.f32.mrf.mxu0
      %836 = vmatprep.mubr.f32.mxu0 0.0
      %837 = vmatmul.mubr.f32.gmra.mxu0 %v399
      %v838 = vpop.f32.mrf.mxu0
      %v839 = vadd.f32 %v605, %v838
      %v840 = vpop.f32.mrf.mxu0
      %841 = vmatprep.mubr.f32.mxu0 0.0
      %842 = vmatmul.mubr.f32.gmra.mxu0 %v402
      %v843 = vpop.f32.mrf.mxu0
      %v844 = vadd.f32 %v610, %v843
      %v845 = vpop.f32.mrf.mxu0
      %846 = vmatprep.mubr.f32.mxu0 0.0
      %847 = vmatmul.mubr.f32.gmra.mxu0 %v405
      %v848 = vpop.f32.mrf.mxu0
      %v849 = vadd.f32 %v615, %v848
      %v850 = vpop.f32.mrf.mxu0
      %851 = vmatprep.mubr.f32.mxu0 0.0
      %852 = vmatmul.mubr.f32.gmra.mxu0 %v408
      %v853 = vpop.f32.mrf.mxu0
      %v854 = vadd.f32 %v620, %v853
      %v855 = vpop.f32.mrf.mxu0
      %856 = vmatprep.mubr.f32.mxu0 0.0
      %857 = vmatmul.mubr.f32.gmra.mxu0 %v411
      %v858 = vpop.f32.mrf.mxu0
      %v859 = vadd.f32 %v625, %v858
      %v860 = vpop.f32.mrf.mxu0
      %861 = vmatprep.mubr.f32.mxu0 0.0
      %862 = vmatmul.mubr.f32.gmra.mxu0 %v414
      %v863 = vpop.f32.mrf.mxu0
      %v864 = vadd.f32 %v630, %v863
      %v865 = vpop.f32.mrf.mxu0
      %866 = vmatprep.mubr.f32.mxu0 0.0
      %867 = vmatmul.mubr.f32.gmra.mxu0 %v417
      %v868 = vpop.f32.mrf.mxu0
      %v869 = vadd.f32 %v635, %v868
      %v870 = vpop.f32.mrf.mxu0
      %871 = vmatprep.mubr.f32.mxu0 0.0
      %872 = vmatmul.mubr.f32.gmra.mxu0 %v420
      %v873 = vpop.f32.mrf.mxu0
      %v874 = vadd.f32 %v640, %v873
      %v875 = vpop.f32.mrf.mxu0
      %876 = vmatprep.mubr.f32.mxu0 0.0
      %877 = vmatmul.mubr.f32.gmra.mxu0 %v423
      %v878 = vpop.f32.mrf.mxu0
      %v879 = vadd.f32 %v645, %v878
      %v880 = vpop.f32.mrf.mxu0
      %881 = vmatprep.mubr.f32.mxu0 0.0
      %882 = vmatmul.mubr.f32.gmra.mxu0 %v426
      %v883 = vpop.f32.mrf.mxu0
      %v884 = vadd.f32 %v650, %v883
      %v885 = vpop.f32.mrf.mxu0
      %886 = vmatprep.mubr.f32.mxu0 0.0
      %887 = vmatmul.mubr.f32.gmra.mxu0 %v429
      %v888 = vpop.f32.mrf.mxu0
      %v889 = vadd.f32 %v655, %v888
      %v890 = vpop.f32.mrf.mxu0
      %891 = vmatprep.mubr.f32.mxu0 0.0
      %892 = vmatmul.mubr.f32.gmra.mxu0 %v432
      %v893 = vpop.f32.mrf.mxu0
      %v894 = vadd.f32 %v660, %v893
      %v895 = vpop.f32.mrf.mxu0
      %896 = vmatprep.mubr.f32.mxu0 0.0
      %897 = vmatmul.mubr.f32.gmra.mxu0 %v435
      %v898 = vpop.f32.mrf.mxu0
      %v899 = vadd.f32 %v665, %v898
      %v900 = vpop.f32.mrf.mxu0
      %901 = vmatprep.mubr.f32.mxu0 0.0
      %902 = vmatmul.mubr.f32.gmra.mxu0 %v438
      %v903 = vpop.f32.mrf.mxu0
      %v904 = vadd.f32 %v670, %v903
      %v905 = vpop.f32.mrf.mxu0
      %906 = vmatprep.mubr.f32.mxu0 0.0
      %907 = vmatmul.mubr.f32.gmra.mxu0 %v441
      %v908 = vpop.f32.mrf.mxu0
      %v909 = vadd.f32 %v675, %v908
      %v910 = vpop.f32.mrf.mxu0
      %911 = vdwg.mxu0
      %s912 = scalar_lea.vmem %s278, 32
      %v913 = vld [vmem:[%s912] sm:$0xff]
      %v914 = vld [vmem:[%s912 + $0x8] sm:$0xf]
      %v916 = vsel %vm352, %v345, 0
      %v919 = vsel %vm352, %v346, 0
      %v922 = vsel %vm449, %v914, 0
      %924 = vmatprep.subr.mxu0 0.0
      %925 = vmatpush1.msra.mxu0 0.0
      %926 = vmatprep.subr.mxu0 0.0
      %927 = vmatpush1.msra.mxu0 0.0
      %928 = vmatprep.subr.mxu0 0.0
      %929 = vmatpush1.msra.mxu0 0.0
      %930 = vmatprep.subr.mxu0 0.0
      %931 = vmatpush1.msra.mxu0 0.0
      %932 = vmatprep.subr.mxu0 0.0
      %933 = vmatpush1.msra.mxu0 0.0
      %934 = vmatprep.subr.mxu0 0.0
      %935 = vmatpush1.msra.mxu0 0.0
      %936 = vmatprep.subr.mxu0 0.0
      %937 = vmatpush1.msra.mxu0 0.0
      %938 = vmatprep.subr.mxu0 0.0
      %939 = vmatpush1.msra.mxu0 0.0
      %940 = vmatprep.subr.mxu0 0.0
      %941 = vmatpush1.msra.mxu0 0.0
      %942 = vmatprep.subr.mxu0 0.0
      %943 = vmatpush1.msra.mxu0 0.0
      %944 = vmatprep.subr.mxu0 0.0
      %945 = vmatpush1.msra.mxu0 0.0
      %946 = vmatprep.subr.mxu0 0.0
      %947 = vmatpush1.msra.mxu0 0.0
      %948 = vmatprep.subr.mxu0 0.0
      %949 = vmatpush1.msra.mxu0 0.0
      %950 = vmatprep.subr.mxu0 0.0
      %951 = vmatpush1.msra.mxu0 0.0
      %952 = vmatprep.subr.mxu0 0.0
      %953 = vmatpush1.msra.mxu0 %v922
      %954 = vmatprep.subr.mxu0 0.0
      %955 = vmatpush1.msra.mxu0 %v913
      %956 = vmatprep.subr.mxu0 0.0
      %957 = vmatpush2.msra.mxu0 0.0
      %958 = vmatprep.subr.mxu0 0.0
      %959 = vmatpush2.msra.mxu0 0.0
      %960 = vmatprep.subr.mxu0 0.0
      %961 = vmatpush2.msra.mxu0 0.0
      %962 = vmatprep.subr.mxu0 0.0
      %963 = vmatpush2.msra.mxu0 0.0
      %964 = vmatprep.subr.mxu0 0.0
      %965 = vmatpush2.msra.mxu0 0.0
      %966 = vmatprep.subr.mxu0 0.0
      %967 = vmatpush2.msra.mxu0 0.0
      %968 = vmatprep.subr.mxu0 0.0
      %969 = vmatpush2.msra.mxu0 0.0
      %970 = vmatprep.subr.mxu0 0.0
      %971 = vmatpush2.msra.mxu0 0.0
      %972 = vmatprep.subr.mxu0 0.0
      %973 = vmatpush2.msra.mxu0 0.0
      %974 = vmatprep.subr.mxu0 0.0
      %975 = vmatpush2.msra.mxu0 0.0
      %976 = vmatprep.subr.mxu0 0.0
      %977 = vmatpush2.msra.mxu0 0.0
      %978 = vmatprep.subr.mxu0 0.0
      %979 = vmatpush2.msra.mxu0 0.0
      %980 = vmatprep.subr.mxu0 0.0
      %981 = vmatpush2.msra.mxu0 0.0
      %982 = vmatprep.subr.mxu0 0.0
      %983 = vmatpush2.msra.mxu0 0.0
      %984 = vmatprep.subr.mxu0 0.0
      %985 = vmatpush2.msra.mxu0 0.0
      %986 = vmatprep.subr.mxu0 0.0
      %987 = vmatpush2.msra.mxu0 0.0
      %988 = vmatprep.mubr.f32.mxu0 0.0
      %989 = vmatmul.mubr.f32.gmra.mxu0 %v360
      %v990 = vpop.f32.mrf.mxu0
      %v991 = vadd.f32 0.0, %v990
      %v992 = vpop.f32.mrf.mxu0
      %993 = vmatprep.mubr.f32.mxu0 0.0
      %994 = vmatmul.mubr.f32.gmra.mxu0 %v363
      %v995 = vpop.f32.mrf.mxu0
      %v996 = vadd.f32 0.0, %v995
      %v997 = vpop.f32.mrf.mxu0
      %998 = vmatprep.mubr.f32.mxu0 0.0
      %999 = vmatmul.mubr.f32.gmra.mxu0 %v366
      %v1000 = vpop.f32.mrf.mxu0
      %v1001 = vadd.f32 0.0, %v1000
      %v1002 = vpop.f32.mrf.mxu0
      %1003 = vmatprep.mubr.f32.mxu0 0.0
      %1004 = vmatmul.mubr.f32.gmra.mxu0 %v369
      %v1005 = vpop.f32.mrf.mxu0
      %v1006 = vadd.f32 0.0, %v1005
      %v1007 = vpop.f32.mrf.mxu0
      %1008 = vmatprep.mubr.f32.mxu0 0.0
      %1009 = vmatmul.mubr.f32.gmra.mxu0 %v372
      %v1010 = vpop.f32.mrf.mxu0
      %v1011 = vadd.f32 0.0, %v1010
      %v1012 = vpop.f32.mrf.mxu0
      %1013 = vmatprep.mubr.f32.mxu0 0.0
      %1014 = vmatmul.mubr.f32.gmra.mxu0 %v375
      %v1015 = vpop.f32.mrf.mxu0
      %v1016 = vadd.f32 0.0, %v1015
      %v1017 = vpop.f32.mrf.mxu0
      %1018 = vmatprep.mubr.f32.mxu0 0.0
      %1019 = vmatmul.mubr.f32.gmra.mxu0 %v378
      %v1020 = vpop.f32.mrf.mxu0
      %v1021 = vadd.f32 0.0, %v1020
      %v1022 = vpop.f32.mrf.mxu0
      %1023 = vmatprep.mubr.f32.mxu0 0.0
      %1024 = vmatmul.mubr.f32.gmra.mxu0 %v381
      %v1025 = vpop.f32.mrf.mxu0
      %v1026 = vadd.f32 0.0, %v1025
      %v1027 = vpop.f32.mrf.mxu0
      %1028 = vmatprep.mubr.f32.mxu0 0.0
      %1029 = vmatmul.mubr.f32.gmra.mxu0 %v384
      %v1030 = vpop.f32.mrf.mxu0
      %v1031 = vadd.f32 0.0, %v1030
      %v1032 = vpop.f32.mrf.mxu0
      %1033 = vmatprep.mubr.f32.mxu0 0.0
      %1034 = vmatmul.mubr.f32.gmra.mxu0 %v387
      %v1035 = vpop.f32.mrf.mxu0
      %v1036 = vadd.f32 0.0, %v1035
      %v1037 = vpop.f32.mrf.mxu0
      %1038 = vmatprep.mubr.f32.mxu0 0.0
      %1039 = vmatmul.mubr.f32.gmra.mxu0 %v390
      %v1040 = vpop.f32.mrf.mxu0
      %v1041 = vadd.f32 0.0, %v1040
      %v1042 = vpop.f32.mrf.mxu0
      %1043 = vmatprep.mubr.f32.mxu0 0.0
      %1044 = vmatmul.mubr.f32.gmra.mxu0 %v393
      %v1045 = vpop.f32.mrf.mxu0
      %v1046 = vadd.f32 0.0, %v1045
      %v1047 = vpop.f32.mrf.mxu0
      %1048 = vmatprep.mubr.f32.mxu0 0.0
      %1049 = vmatmul.mubr.f32.gmra.mxu0 %v396
      %v1050 = vpop.f32.mrf.mxu0
      %v1051 = vadd.f32 0.0, %v1050
      %v1052 = vpop.f32.mrf.mxu0
      %1053 = vmatprep.mubr.f32.mxu0 0.0
      %1054 = vmatmul.mubr.f32.gmra.mxu0 %v399
      %v1055 = vpop.f32.mrf.mxu0
      %v1056 = vadd.f32 0.0, %v1055
      %v1057 = vpop.f32.mrf.mxu0
      %1058 = vmatprep.mubr.f32.mxu0 0.0
      %1059 = vmatmul.mubr.f32.gmra.mxu0 %v402
      %v1060 = vpop.f32.mrf.mxu0
      %v1061 = vadd.f32 0.0, %v1060
      %v1062 = vpop.f32.mrf.mxu0
      %1063 = vmatprep.mubr.f32.mxu0 0.0
      %1064 = vmatmul.mubr.f32.gmra.mxu0 %v405
      %v1065 = vpop.f32.mrf.mxu0
      %v1066 = vadd.f32 0.0, %v1065
      %v1067 = vpop.f32.mrf.mxu0
      %1068 = vmatprep.mubr.f32.mxu0 0.0
      %1069 = vmatmul.mubr.f32.gmra.mxu0 %v408
      %v1070 = vpop.f32.mrf.mxu0
      %v1071 = vadd.f32 0.0, %v1070
      %v1072 = vpop.f32.mrf.mxu0
      %1073 = vmatprep.mubr.f32.mxu0 0.0
      %1074 = vmatmul.mubr.f32.gmra.mxu0 %v411
      %v1075 = vpop.f32.mrf.mxu0
      %v1076 = vadd.f32 0.0, %v1075
      %v1077 = vpop.f32.mrf.mxu0
      %1078 = vmatprep.mubr.f32.mxu0 0.0
      %1079 = vmatmul.mubr.f32.gmra.mxu0 %v414
      %v1080 = vpop.f32.mrf.mxu0
      %v1081 = vadd.f32 0.0, %v1080
      %v1082 = vpop.f32.mrf.mxu0
      %1083 = vmatprep.mubr.f32.mxu0 0.0
      %1084 = vmatmul.mubr.f32.gmra.mxu0 %v417
      %v1085 = vpop.f32.mrf.mxu0
      %v1086 = vadd.f32 0.0, %v1085
      %v1087 = vpop.f32.mrf.mxu0
      %1088 = vmatprep.mubr.f32.mxu0 0.0
      %1089 = vmatmul.mubr.f32.gmra.mxu0 %v420
      %v1090 = vpop.f32.mrf.mxu0
      %v1091 = vadd.f32 0.0, %v1090
      %v1092 = vpop.f32.mrf.mxu0
      %1093 = vmatprep.mubr.f32.mxu0 0.0
      %1094 = vmatmul.mubr.f32.gmra.mxu0 %v423
      %v1095 = vpop.f32.mrf.mxu0
      %v1096 = vadd.f32 0.0, %v1095
      %v1097 = vpop.f32.mrf.mxu0
      %1098 = vmatprep.mubr.f32.mxu0 0.0
      %1099 = vmatmul.mubr.f32.gmra.mxu0 %v426
      %v1100 = vpop.f32.mrf.mxu0
      %v1101 = vadd.f32 0.0, %v1100
      %v1102 = vpop.f32.mrf.mxu0
      %1103 = vmatprep.mubr.f32.mxu0 0.0
      %1104 = vmatmul.mubr.f32.gmra.mxu0 %v429
      %v1105 = vpop.f32.mrf.mxu0
      %v1106 = vadd.f32 0.0, %v1105
      %v1107 = vpop.f32.mrf.mxu0
      %1108 = vmatprep.mubr.f32.mxu0 0.0
      %1109 = vmatmul.mubr.f32.gmra.mxu0 %v432
      %v1110 = vpop.f32.mrf.mxu0
      %v1111 = vadd.f32 0.0, %v1110
      %v1112 = vpop.f32.mrf.mxu0
      %1113 = vmatprep.mubr.f32.mxu0 0.0
      %1114 = vmatmul.mubr.f32.gmra.mxu0 %v435
      %v1115 = vpop.f32.mrf.mxu0
      %v1116 = vadd.f32 0.0, %v1115
      %v1117 = vpop.f32.mrf.mxu0
      %1118 = vmatprep.mubr.f32.mxu0 0.0
      %1119 = vmatmul.mubr.f32.gmra.mxu0 %v438
      %v1120 = vpop.f32.mrf.mxu0
      %v1121 = vadd.f32 0.0, %v1120
      %v1122 = vpop.f32.mrf.mxu0
      %1123 = vmatprep.mubr.f32.mxu0 0.0
      %1124 = vmatmul.mubr.f32.gmra.mxu0 %v441
      %v1125 = vpop.f32.mrf.mxu0
      %v1126 = vadd.f32 0.0, %v1125
      %v1127 = vpop.f32.mrf.mxu0
      %1128 = vmatprep.mubr.f32.mxu0 0.0
      %1129 = vmatmul.mubr.f32.gmra.mxu0 %v444
      %v1130 = vpop.f32.mrf.mxu0
      %v1131 = vadd.f32 0.0, %v1130
      %v1132 = vpop.f32.mrf.mxu0
      %1133 = vmatprep.mubr.f32.mxu0 0.0
      %1134 = vmatmul.mubr.f32.gmra.mxu0 %v447
      %v1135 = vpop.f32.mrf.mxu0
      %v1136 = vadd.f32 0.0, %v1135
      %v1137 = vpop.f32.mrf.mxu0
      %1138 = vmatprep.mubr.f32.mxu0 0.0
      %1139 = vmatmul.mubr.f32.gmra.mxu0 %v916
      %v1140 = vpop.f32.mrf.mxu0
      %v1141 = vadd.f32 0.0, %v1140
      %v1142 = vpop.f32.mrf.mxu0
      %1143 = vmatprep.mubr.f32.mxu0 0.0
      %1144 = vmatmul.mubr.f32.gmra.mxu0 %v919
      %v1145 = vpop.f32.mrf.mxu0
      %v1146 = vadd.f32 0.0, %v1145
      %v1147 = vpop.f32.mrf.mxu0
      %1148 = vdwg.mxu0
      %v1149 = vadd.f32 %v754, %v991
      %v1150 = vadd.f32 %v759, %v996
      %v1151 = vadd.f32 %v764, %v1001
      %v1152 = vadd.f32 %v769, %v1006
      %v1153 = vadd.f32 %v774, %v1011
      %v1154 = vadd.f32 %v779, %v1016
      %v1155 = vadd.f32 %v784, %v1021
      %v1156 = vadd.f32 %v789, %v1026
      %v1157 = vadd.f32 %v794, %v1031
      %v1158 = vadd.f32 %v799, %v1036
      %v1159 = vadd.f32 %v804, %v1041
      %v1160 = vadd.f32 %v809, %v1046
      %v1161 = vadd.f32 %v814, %v1051
      %v1162 = vadd.f32 %v819, %v1056
      %v1163 = vadd.f32 %v824, %v1061
      %v1164 = vadd.f32 %v829, %v1066
      %v1165 = vadd.f32 %v834, %v1071
      %v1166 = vadd.f32 %v839, %v1076
      %v1167 = vadd.f32 %v844, %v1081
      %v1168 = vadd.f32 %v849, %v1086
      %v1169 = vadd.f32 %v854, %v1091
      %v1170 = vadd.f32 %v859, %v1096
      %v1171 = vadd.f32 %v864, %v1101
      %v1172 = vadd.f32 %v869, %v1106
      %v1173 = vadd.f32 %v874, %v1111
      %v1174 = vadd.f32 %v879, %v1116
      %v1175 = vadd.f32 %v884, %v1121
      %v1176 = vadd.f32 %v889, %v1126
      %v1177 = vadd.f32 %v894, %v1131
      %v1178 = vadd.f32 %v899, %v1136
      %v1179 = vadd.f32 %v904, %v1141
      %v1180 = vadd.f32 %v909, %v1146
      %1181 = vst [vmem:[%s295] sm:$0xff] %v1149
      %1182 = vst [vmem:[%s295 + $0x8] sm:$0xff] %v1150
      %1183 = vst [vmem:[%s295 + $0x10] sm:$0xff] %v1151
      %1184 = vst [vmem:[%s295 + $0x18] sm:$0xff] %v1152
      %1185 = vst [vmem:[%s295 + $0x20] sm:$0xff] %v1153
      %1186 = vst [vmem:[%s295 + $0x28] sm:$0xff] %v1154
      %1187 = vst [vmem:[%s295 + $0x30] sm:$0xff] %v1155
      %1188 = vst [vmem:[%s295 + $0x38] sm:$0xff] %v1156
      %1189 = vst [vmem:[%s295 + $0x40] sm:$0xff] %v1157
      %1190 = vst [vmem:[%s295 + $0x48] sm:$0xff] %v1158
      %1191 = vst [vmem:[%s295 + $0x50] sm:$0xff] %v1159
      %1192 = vst [vmem:[%s295 + $0x58] sm:$0xff] %v1160
      %1193 = vst [vmem:[%s295 + $0x60] sm:$0xff] %v1161
      %1194 = vst [vmem:[%s295 + $0x68] sm:$0xff] %v1162
      %1195 = vst [vmem:[%s295 + $0x70] sm:$0xff] %v1163
      %1196 = vst [vmem:[%s295 + $0x78] sm:$0xff] %v1164
      %1197 = vst [vmem:[%s295 + $0x80] sm:$0xff] %v1165
      %1198 = vst [vmem:[%s295 + $0x88] sm:$0xff] %v1166
      %1199 = vst [vmem:[%s295 + $0x90] sm:$0xff] %v1167
      %1200 = vst [vmem:[%s295 + $0x98] sm:$0xff] %v1168
      %1201 = vst [vmem:[%s295 + $0xa0] sm:$0xff] %v1169
      %1202 = vst [vmem:[%s295 + $0xa8] sm:$0xff] %v1170
      %1203 = vst [vmem:[%s295 + $0xb0] sm:$0xff] %v1171
      %1204 = vst [vmem:[%s295 + $0xb8] sm:$0xff] %v1172
      %1205 = vst [vmem:[%s295 + $0xc0] sm:$0xff] %v1173
      %1206 = vst [vmem:[%s295 + $0xc8] sm:$0xff] %v1174
      %1207 = vst [vmem:[%s295 + $0xd0] sm:$0xff] %v1175
      %1208 = vst [vmem:[%s295 + $0xd8] sm:$0xff] %v1176
      %1209 = vst [vmem:[%s295 + $0xe0] sm:$0xff] %v1177
      %1210 = vst [vmem:[%s295 + $0xe8] sm:$0xff] %v1178
      %1211 = vst [vmem:[%s295 + $0xf0] sm:$0xff] %v1179
      %1212 = vst [vmem:[%s295 + $0xf8] sm:$0xff] %v1180
      %v1213 = vadd.f32 %v1149, %v1150
      %v1214 = vadd.f32 %v1213, %v1151
      %v1215 = vadd.f32 %v1214, %v1152
      %v1216 = vadd.f32 %v1215, %v1153
      %v1217 = vadd.f32 %v1216, %v1154
      %v1218 = vadd.f32 %v1217, %v1155
      %v1219 = vadd.f32 %v1218, %v1156
      %v1220 = vadd.f32 %v1219, %v1157
      %v1221 = vadd.f32 %v1220, %v1158
      %v1222 = vadd.f32 %v1221, %v1159
      %v1223 = vadd.f32 %v1222, %v1160
      %v1224 = vadd.f32 %v1223, %v1161
      %v1225 = vadd.f32 %v1224, %v1162
      %v1226 = vadd.f32 %v1225, %v1163
      %v1227 = vadd.f32 %v1226, %v1164
      %v1228 = vadd.f32 %v1227, %v1165
      %v1229 = vadd.f32 %v1228, %v1166
      %v1230 = vadd.f32 %v1229, %v1167
      %v1231 = vadd.f32 %v1230, %v1168
      %v1232 = vadd.f32 %v1231, %v1169
      %v1233 = vadd.f32 %v1232, %v1170
      %v1234 = vadd.f32 %v1233, %v1171
      %v1235 = vadd.f32 %v1234, %v1172
      %v1236 = vadd.f32 %v1235, %v1173
      %v1237 = vadd.f32 %v1236, %v1174
      %v1238 = vadd.f32 %v1237, %v1175
      %v1239 = vadd.f32 %v1238, %v1176
      %v1240 = vadd.f32 %v1239, %v1177
      %v1241 = vadd.f32 %v1240, %v1178
      %v1242 = vadd.f32 %v1241, %v1179
      %v1243 = vadd.f32 %v1242, %v1180
      %v1244 = vrot.slane %v1243, 4
      %v1245 = vadd.f32 %v1243, %v1244
      %v1246 = vrot.slane %v1245, 2
      %v1247 = vadd.f32 %v1245, %v1246
      %v1248 = vrot.slane %v1247, 1
      %v1249 = vadd.f32 %v1247, %v1248
      %v1250 = vmul.f32 %v1149, %v1149
      %v1251 = vmul.f32 %v1150, %v1150
      %v1252 = vmul.f32 %v1151, %v1151
      %v1253 = vmul.f32 %v1152, %v1152
      %v1254 = vmul.f32 %v1153, %v1153
      %v1255 = vmul.f32 %v1154, %v1154
      %v1256 = vmul.f32 %v1155, %v1155
      %v1257 = vmul.f32 %v1156, %v1156
      %v1258 = vmul.f32 %v1157, %v1157
      %v1259 = vmul.f32 %v1158, %v1158
      %v1260 = vmul.f32 %v1159, %v1159
      %v1261 = vmul.f32 %v1160, %v1160
      %v1262 = vmul.f32 %v1161, %v1161
      %v1263 = vmul.f32 %v1162, %v1162
      %v1264 = vmul.f32 %v1163, %v1163
      %v1265 = vmul.f32 %v1164, %v1164
      %v1266 = vmul.f32 %v1165, %v1165
      %v1267 = vmul.f32 %v1166, %v1166
      %v1268 = vmul.f32 %v1167, %v1167
      %v1269 = vmul.f32 %v1168, %v1168
      %v1270 = vmul.f32 %v1169, %v1169
      %v1271 = vmul.f32 %v1170, %v1170
      %v1272 = vmul.f32 %v1171, %v1171
      %v1273 = vmul.f32 %v1172, %v1172
      %v1274 = vmul.f32 %v1173, %v1173
      %v1275 = vmul.f32 %v1174, %v1174
      %v1276 = vmul.f32 %v1175, %v1175
      %v1277 = vmul.f32 %v1176, %v1176
      %v1278 = vmul.f32 %v1177, %v1177
      %v1279 = vmul.f32 %v1178, %v1178
      %v1280 = vmul.f32 %v1179, %v1179
      %v1281 = vmul.f32 %v1180, %v1180
      %v1282 = vadd.f32 %v1250, %v1251
      %v1283 = vadd.f32 %v1282, %v1252
      %v1284 = vadd.f32 %v1283, %v1253
      %v1285 = vadd.f32 %v1284, %v1254
      %v1286 = vadd.f32 %v1285, %v1255
      %v1287 = vadd.f32 %v1286, %v1256
      %v1288 = vadd.f32 %v1287, %v1257
      %v1289 = vadd.f32 %v1288, %v1258
      %v1290 = vadd.f32 %v1289, %v1259
      %v1291 = vadd.f32 %v1290, %v1260
      %v1292 = vadd.f32 %v1291, %v1261
      %v1293 = vadd.f32 %v1292, %v1262
      %v1294 = vadd.f32 %v1293, %v1263
      %v1295 = vadd.f32 %v1294, %v1264
      %v1296 = vadd.f32 %v1295, %v1265
      %v1297 = vadd.f32 %v1296, %v1266
      %v1298 = vadd.f32 %v1297, %v1267
      %v1299 = vadd.f32 %v1298, %v1268
      %v1300 = vadd.f32 %v1299, %v1269
      %v1301 = vadd.f32 %v1300, %v1270
      %v1302 = vadd.f32 %v1301, %v1271
      %v1303 = vadd.f32 %v1302, %v1272
      %v1304 = vadd.f32 %v1303, %v1273
      %v1305 = vadd.f32 %v1304, %v1274
      %v1306 = vadd.f32 %v1305, %v1275
      %v1307 = vadd.f32 %v1306, %v1276
      %v1308 = vadd.f32 %v1307, %v1277
      %v1309 = vadd.f32 %v1308, %v1278
      %v1310 = vadd.f32 %v1309, %v1279
      %v1311 = vadd.f32 %v1310, %v1280
      %v1312 = vadd.f32 %v1311, %v1281
      %v1313 = vrot.slane %v1312, 4
      %v1314 = vadd.f32 %v1312, %v1313
      %v1315 = vrot.slane %v1314, 2
      %v1316 = vadd.f32 %v1314, %v1315
      %v1317 = vrot.slane %v1316, 1
      %v1318 = vadd.f32 %v1316, %v1317
      %vm1319 = vcmask 1040384
      %v1320 = vsel %vm1319, %v1249, %v1318
      %1321 = vst [vmem:[%s310] sm:$0x3] %v1320
      %s1322 = smul.u32 16, %s22
      %s1323 = smul.u32 2, %s23
      %p1324 = scmp.lt.s32.totalorder %s21, 1
      %s1325 = scalar_select %p1324, %s21, 1
      %p1326 = scmp.lt.s32.totalorder %s1322, 15
      %s1327 = scalar_select %p1326, %s1322, 15
      %p1328 = scmp.lt.s32.totalorder %s1323, 1
      %s1329 = scalar_select %p1328, %s1323, 1
      %p1330 = scmp.lt.s32.totalorder %s24, 0
      %s1331 = scalar_select %p1330, %s24, 0
      %s1332 = sadd.s32 %s1331, %s1329
      %s1333 = smul.addr %s1327, 2
      %s1334 = sadd.s32 %s1332, %s1333
      %s1335 = smul.addr %s1325, 32
      %s1336 = sadd.s32 %s1334, %s1335
      %s1337 = smul.addr %s1336, 8
      %s1338 = scalar_lea.vmem %s2, %s1337
      %p1339 = scmp.lt.s32.totalorder %s21, 1
      %s1340 = scalar_select %p1339, %s21, 1
      %p1341 = scmp.lt.s32.totalorder %s22, 0
      %s1342 = scalar_select %p1341, %s22, 0
      %p1343 = scmp.lt.s32.totalorder %s23, 0
      %s1344 = scalar_select %p1343, %s23, 0
      %p1345 = scmp.lt.s32.totalorder %s24, 0
      %s1346 = scalar_select %p1345, %s24, 0
      %s1347 = sadd.s32 %s1346, %s1344
      %s1348 = sadd.s32 %s1347, %s1342
      %s1349 = sadd.s32 %s1348, %s1340
      %s1350 = smul.addr %s1349, 2
      %s1351 = scalar_lea.vmem %s3, %s1350
      // Predicated region
      $region29: #{up_conv_forward.1} parent=27 // pred_check
        %p1352 = pneg %p121
      $region30: #{up_conv_forward.1} parent=27 // pred_check_branch
        %1354 = sbr.rel (%p1352) target = $region32
      $region31: #{up_conv_forward.1} parent=27 // pred_region
        %s1355 = smul.u32 16, %s22
        %s1356 = smul.u32 2, %s23
      $region32: #{up_conv_forward.1} parent=27 // pred_fallthru
        _
      // Predicated region
      $region33: #{up_conv_forward.1} parent=27 // pred_check
        %p1357 = pneg %p153
      $region34: #{up_conv_forward.1} parent=27 // pred_check_branch
        %1359 = sbr.rel (%p1357) target = $region36
      $region35: #{up_conv_forward.1} parent=27 // pred_region
        _
      $region36: #{up_conv_forward.1} parent=27 // pred_fallthru
        _
    $region28: #{up_conv_forward.1} parent=5 // pred_fallthru
      _
    %p1360 = scmp.le.s32.totalorder 2, %s10
    // Predicated region
    $region37: #{up_conv_forward.1} parent=5 // pred_check
      %p1361 = pneg %p1360
    $region38: #{up_conv_forward.1} parent=5 // pred_check_branch
      %1363 = sbr.rel (%p1361) target = $region40
    $region39: #{up_conv_forward.1} parent=5 // pred_region
      %s1364 = ssub.s32 %s10, 2
      // Predicated region
      $region41: #{up_conv_forward.1} parent=39 // pred_check
        %p1365 = pneg %p127
      $region42: #{up_conv_forward.1} parent=39 // pred_check_branch
        %1367 = sbr.rel (%p1365) target = $region44
      $region43: #{up_conv_forward.1} parent=39 // pred_region
        %s1368 = smul.u32 16, %s26
        %s1369 = smul.u32 2, %s27
        %p1370 = scmp.lt.s32.totalorder %s25, 1
        %s1371 = scalar_select %p1370, %s25, 1
        %p1372 = scmp.lt.s32.totalorder %s1368, 15
        %s1373 = scalar_select %p1372, %s1368, 15
        %p1374 = scmp.lt.s32.totalorder %s1369, 1
        %s1375 = scalar_select %p1374, %s1369, 1
        %p1376 = scmp.lt.s32.totalorder %s28, 0
        %s1377 = scalar_select %p1376, %s28, 0
        %s1378 = sadd.s32 %s1377, %s1375
        %s1379 = smul.addr %s1373, 2
        %s1380 = sadd.s32 %s1378, %s1379
        %s1381 = smul.addr %s1371, 32
        %s1382 = sadd.s32 %s1380, %s1381
        %s1383 = smul.addr %s1382, 8
        %s1384 = scalar_lea.vmem %s2, %s1383
      $region44: #{up_conv_forward.1} parent=39 // pred_fallthru
        _
      // Predicated region
      $region45: #{up_conv_forward.1} parent=39 // pred_check
        %p1385 = pneg %p159
      $region46: #{up_conv_forward.1} parent=39 // pred_check_branch
        %1387 = sbr.rel (%p1385) target = $region48
      $region47: #{up_conv_forward.1} parent=39 // pred_region
        %p1388 = scmp.lt.s32.totalorder %s25, 1
        %s1389 = scalar_select %p1388, %s25, 1
        %p1390 = scmp.lt.s32.totalorder %s26, 0
        %s1391 = scalar_select %p1390, %s26, 0
        %p1392 = scmp.lt.s32.totalorder %s27, 0
        %s1393 = scalar_select %p1392, %s27, 0
        %p1394 = scmp.lt.s32.totalorder %s28, 0
        %s1395 = scalar_select %p1394, %s28, 0
        %s1396 = sadd.s32 %s1395, %s1393
        %s1397 = sadd.s32 %s1396, %s1391
        %s1398 = sadd.s32 %s1397, %s1389
        %s1399 = smul.addr %s1398, 2
        %s1400 = scalar_lea.vmem %s3, %s1399
      $region48: #{up_conv_forward.1} parent=39 // pred_fallthru
        _
    $region40: #{up_conv_forward.1} parent=5 // pred_fallthru
      _
  $region6: #{up_conv_forward.1} parent=0 // loop_footer
    %s14 = sadd.s32 1, %s10
  $region7: #{up_conv_forward.1} parent=0 // loop_footer_branch
    %9 = sbr.rel target = $region3
  $region8: #{up_conv_forward.1} parent=0 // loop_exit
    _

</llo_original>
